<compile_context>
chip_gen: v7x
topology: tpu7x:2x2x1
jax: 0.10.0
libtpu: 0.0.40
codegen_flags: <defaults>
</compile_context>

<pallas_src>
import numpy as np
import jax
import jax.numpy as jnp
from jax import lax
from jax.experimental import pallas as pl
from jax.experimental.pallas import tpu as pltpu

# ---- model hyperparameters (consistent with the PyTorch module) -------------
CLASSES = 4
INPUT_CH = 4        # EEG electrodes (conv "H" axis)
INPUT_TIME = 64     # time samples (conv "W" axis)
F1 = 8              # block1 temporal filters
F2 = 16             # block2/3 channels
K1 = 64             # block1 temporal kernel width
K3 = 16             # block3 temporal kernel width
BN_EPS = 1e-5

T = INPUT_TIME          # 64
T4 = T // 4             # 16  (after AvgPool(1,4))
T32 = T4 // 8           # 2   (after AvgPool(1,8))
CK1 = INPUT_CH * K1     # 256 fused block-1/2 contraction depth
N_OUT = F2 * T32        # 32  flattened features into the classifier

# ---- per-grid-step lane packing ---------------------------------------------
S_BLK = 8               # samples packed per grid step
BT_BLK = S_BLK * T      # 512 packed columns  (multiple of 256: fills v6e MXU)
BT4_BLK = S_BLK * T4    # 128 pooled columns  (exactly one lane tile)


def _elu(x):
    # TODO(synk): PyTorch ELU uses expm1; exp(min(x,0))-1 keeps the EUP exp path
    # and avoids overflow on the (selected-away) positive branch.
    return jnp.where(x > 0, x, jnp.exp(jnp.minimum(x, 0.0)) - 1.0)


def eegnet_kernel(xcol_ref, w12_ref, p4_ref, w3m_ref, w4_ref, p8_ref, wcls_ref,
                  bias_ref, o_ref):
    bias = bias_ref[...]                       # (F2, 3) f32 slab
    b12 = bias[:, 0:1]                         # fused BN1/BN2 bias
    b3 = bias[:, 1:2]                          # BN3 bias
    bclf = bias[0:CLASSES, 2:3]                # classifier bias

    # ---- blocks 1+2 (+BN1, BN2) fused: ONE 256-deep MXU matmul (bf16 ops) ----
    d2 = jnp.dot(w12_ref[...], xcol_ref[...],
                 preferred_element_type=jnp.float32) + b12          # (F2, BT_BLK)
    d2 = _elu(d2)
    # TODO(synk): F.dropout(p=0.25) is stochastic in the PyTorch forward; identity here (eval mode).

    # ---- AvgPool(1,4) as one matmul (bf16 operands, f32 accumulate) ----------
    pp = jnp.dot(d2.astype(jnp.bfloat16), p4_ref[...],
                 preferred_element_type=jnp.float32)                # (F2, BT4_BLK)

    # ---- block-3 depthwise (1,16) conv: static XLU lane rolls + masked taps --
    # (the per-sample zero padding and the batch-seam mask are folded into w3m;
    #  4 partial sums break the 16-deep serial add chain)
    parts = []
    for g in range(4):
        acc = None
        for k in range(4 * g, 4 * g + 4):
            sh = (7 - k) % BT4_BLK
            ppk = pp if sh == 0 else pltpu.roll(pp, shift=sh, axis=1)
            term = w3m_ref[k] * ppk
            acc = term if acc is None else acc + term
        parts.append(acc)
    d3 = (parts[0] + parts[1]) + (parts[2] + parts[3])               # (F2, BT4_BLK)

    # ---- 1x1 conv with bn3 scale folded in, bias, ELU -------------------------
    d4 = jnp.dot(w4_ref[...], d3.astype(jnp.bfloat16),
                 preferred_element_type=jnp.float32) + b3            # (F2, BT4_BLK)
    d4 = _elu(d4)
    # TODO(synk): second F.dropout(p=0.25) also treated as identity (eval mode).

    # ---- AvgPool(1,8) + flatten + Linear: T32 accumulated matmuls ------------
    # (no cross-sublane concatenate / restack; epilogue kept in f32 — negligible)
    logits = bclf
    for t in range(T32):
        pooled_t = jnp.dot(d4, p8_ref[t],
                           preferred_element_type=jnp.float32)       # (F2, S_BLK)
        logits = logits + jnp.dot(wcls_ref[t], pooled_t,
                                  preferred_element_type=jnp.float32)  # (CLASSES, S_BLK)
    o_ref[0] = logits


@jax.jit
def eegnet_forward(x, kparams):
    """x: (B, 1, INPUT_CH, INPUT_TIME) -> logits (B, CLASSES)."""
    B = x.shape[0]
    assert x.shape[1:] == (1, INPUT_CH, INPUT_TIME)
    nb = (B + S_BLK - 1) // S_BLK                  # grid blocks (batch padded)
    b_pad = nb * S_BLK

    xs = x[:, 0]                                   # (B, C, T)
    if b_pad != B:
        xs = jnp.pad(xs, ((0, b_pad - B), (0, 0), (0, 0)))

    # ZeroPad2d((31,32,0,0)) + im2col via 64 static slices (no gather), built
    # directly in (c*K1+k, b*T+t) row/col order (transpose done on the small,
    # un-amplified array), emitted in bf16 to halve HBM traffic.
    xp = jnp.pad(xs, ((0, 0), (0, 0), (31, 32))).astype(jnp.bfloat16)  # (b_pad,C,127)
    xpc = jnp.transpose(xp, (1, 0, 2))                                  # (C,b_pad,127)
    xcol = jnp.stack([xpc[:, :, k:k + T] for k in range(K1)], axis=1)   # (C,K1,b_pad,T)
    xcol = xcol.reshape(CK1, b_pad * T)

    # Advisory cost estimate (per-block MXU/VPU flops, ELU exps, I/O bytes).
    flops_blk = (2 * F2 * CK1 * BT_BLK
                 + 2 * F2 * BT_BLK * BT4_BLK
                 + 2 * K3 * F2 * BT4_BLK
                 + 2 * F2 * F2 * BT4_BLK
                 + 2 * T32 * (F2 * BT4_BLK * S_BLK + CLASSES * F2 * S_BLK))
    trans_blk = F2 * (BT_BLK + BT4_BLK)
    bytes_acc = (xcol.size * xcol.dtype.itemsize
                 + sum(int(p.size) * p.dtype.itemsize for p in kparams)
                 + nb * CLASSES * S_BLK * 4)

    out = pl.pallas_call(
        eegnet_kernel,
        out_shape=jax.ShapeDtypeStruct((nb, CLASSES, S_BLK), jnp.float32),
        grid=(nb,),
        in_specs=[
            # per-block activations (only input whose block index moves)
            pl.BlockSpec((CK1, BT_BLK), lambda i: (0, i)),
            # parameters: constant index maps -> DMA'd once, VMEM-resident
            pl.BlockSpec((F2, CK1), lambda i: (0, 0)),               # w12
            pl.BlockSpec((BT_BLK, BT4_BLK), lambda i: (0, 0)),       # p4
            pl.BlockSpec((K3, F2, BT4_BLK), lambda i: (0, 0, 0)),    # w3m
            pl.BlockSpec((F2, F2), lambda i: (0, 0)),                # w4bn
            pl.BlockSpec((T32, BT4_BLK, S_BLK), lambda i: (0, 0, 0)),  # p8
            pl.BlockSpec((T32, CLASSES, F2), lambda i: (0, 0, 0)),     # wcls
            pl.BlockSpec((F2, 3), lambda i: (0, 0)),                 # bias slab
        ],
        out_specs=pl.BlockSpec((1, CLASSES, S_BLK), lambda i: (i, 0, 0)),
        compiler_params=pltpu.CompilerParams(
            dimension_semantics=("parallel",),       # batch blocks -> both TCs on v7x
            vmem_limit_bytes=32 * 1024 * 1024),      # explicit budget (safe on v7x)
        cost_estimate=pl.CostEstimate(flops=nb * flops_blk,
                                      transcendentals=nb * trans_blk,
                                      bytes_accessed=int(bytes_acc)),
    )(xcol, *kparams)

    # (nb, CLASSES, S_BLK) -> (B, CLASSES): tiny epilogue on the logits only.
    return out.transpose(0, 2, 1).reshape(b_pad, CLASSES)[:B]


def init_raw_params(key):
    ks = list(jax.random.split(key, 20))
    it = iter(ks)

    def nrm(shape, scale=0.1):
        return scale * jax.random.normal(next(it), shape, jnp.float32)

    def bn_params(n):
        g = 1.0 + nrm((n,))
        b = nrm((n,))
        m = nrm((n,))
        v = 1.0 + 0.5 * jax.random.uniform(next(it), (n,), jnp.float32)
        return (g, b, m, v)

    return {
        'w1': nrm((F1, 1, 1, K1)),
        'bn1': bn_params(F1),
        'w2': nrm((F2, 1, INPUT_CH, 1), 0.3),
        'bn2': bn_params(F2),
        'w3': nrm((F2, 1, 1, K3), 0.2),
        'w4': nrm((F2, F2, 1, 1), 0.2),
        'bn3': bn_params(F2),
        'wclf': nrm((CLASSES, N_OUT), 0.2),
        'bclf': nrm((CLASSES,), 0.1),
    }


def derive_kernel_params(raw):
    """Fold BN/conv algebra in f32, cast the MXU operands to bf16 last."""
    f32 = jnp.float32

    def fold(bn):
        g, b, m, v = bn
        s = g / jnp.sqrt(v + BN_EPS)
        return s, b - m * s

    # Blocks 1+2: conv1 + BN1 + depthwise conv2 + BN2 folded into (F2, C*K1).
    w1 = raw['w1'][:, 0, 0, :].astype(f32)                 # (F1, K1)
    s1, b1f = fold(raw['bn1'])
    w2 = raw['w2'][:, 0, :, 0].astype(f32)                 # (F2, C)
    s2, b2f = fold(raw['bn2'])
    fmap = jnp.arange(F2) // (F2 // F1)                    # depthwise group map
    w1s = (s1[:, None] * w1)[fmap]                         # (F2, K1)
    w12 = (s2[:, None, None] * w2[:, :, None] * w1s[:, None, :]).reshape(F2, CK1)
    b12 = s2 * b1f[fmap] * jnp.sum(w2, axis=1) + b2f       # (F2,)

    # AvgPool(1,4) as a lane-packed (BT_BLK, BT4_BLK) matrix (per grid block).
    jj = jnp.arange(BT_BLK)
    j4 = jnp.arange(BT4_BLK)
    p4 = (((jj[:, None] // T) == (j4[None, :] // T4)) &
          (((jj[:, None] % T) // 4) == (j4[None, :] % T4))).astype(f32) / 4.0

    # Depthwise (1,16) tap weights with validity mask folded in (zero padding +
    # batch-seam safety for the cyclic lane rolls).
    w3 = raw['w3'][:, 0, 0, :].astype(f32)                 # (F2, K3)
    t_rel = (j4 % T4)[None, :] + jnp.arange(K3)[:, None] - 7   # (K3, BT4_BLK)
    valid = ((t_rel >= 0) & (t_rel < T4)).astype(f32)
    w3m = w3.T[:, :, None] * valid[:, None, :]             # (K3, F2, BT4_BLK)

    # 1x1 conv with bn3 scale folded.
    w4 = raw['w4'][:, :, 0, 0].astype(f32)
    s3, b3f = fold(raw['bn3'])
    w4bn = s3[:, None] * w4                                # (F2, F2)

    # AvgPool(1,8), split per t32 so the classifier needs no restack.
    s_id = jnp.arange(S_BLK)
    t_id = jnp.arange(T32)
    p8 = (((j4[None, :, None] // T4) == s_id[None, None, :]) &
          (((j4[None, :, None] % T4) // 8) == t_id[:, None, None])).astype(f32) / 8.0

    # Classifier split by t32 (matches PyTorch flatten order f*T32 + t32).
    wcls = raw['wclf'].reshape(CLASSES, F2, T32).transpose(2, 0, 1).astype(f32)

    # All tiny biases consolidated into one (F2, 3) f32 slab (one DMA).
    bclf_col = jnp.concatenate([raw['bclf'].astype(f32),
                                jnp.zeros((F2 - CLASSES,), f32)])
    bias = jnp.stack([b12, b3f, bclf_col], axis=1)         # (F2, 3)

    return (w12.astype(jnp.bfloat16), p4.astype(jnp.bfloat16), w3m,
            w4bn.astype(jnp.bfloat16), p8, wcls, bias)


def reference_forward(x, raw):
    """Pure-JAX f32 reference mirroring the PyTorch eval-mode forward."""
    dn = ('NCHW', 'OIHW', 'NCHW')

    def bn(y, p):
        g, b, m, v = p
        s = g / jnp.sqrt(v + BN_EPS)
        return y * s[None, :, None, None] + (b - m * s)[None, :, None, None]

    def elu(y):
        return jnp.where(y > 0, y, jnp.expm1(y))

    B = x.shape[0]
    y = jnp.pad(x, ((0, 0), (0, 0), (0, 0), (31, 32)))
    y = lax.conv_general_dilated(y, raw['w1'], (1, 1), 'VALID', dimension_numbers=dn)
    y = bn(y, raw['bn1'])
    y = lax.conv_general_dilated(y, raw['w2'], (1, 1), 'VALID',
                                 dimension_numbers=dn, feature_group_count=F1)
    y = elu(bn(y, raw['bn2']))
    y = y.reshape(B, F2, 1, T4, 4).mean(-1)
    y = jnp.pad(y, ((0, 0), (0, 0), (0, 0), (7, 8)))
    y = lax.conv_general_dilated(y, raw['w3'], (1, 1), 'VALID',
                                 dimension_numbers=dn, feature_group_count=F2)
    y = lax.conv_general_dilated(y, raw['w4'], (1, 1), 'VALID', dimension_numbers=dn)
    y = elu(bn(y, raw['bn3']))
    y = y.reshape(B, F2, 1, T32, 8).mean(-1)
    y = y.reshape(B, -1)
    return y @ raw['wclf'].T + raw['bclf'][None, :]


if __name__ == "__main__":
    key = jax.random.PRNGKey(0)
    kx, kp = jax.random.split(key)
    raw = init_raw_params(kp)
    kparams = derive_kernel_params(raw)

    # Small demo batch: one grid block of 8 lane-packed samples (2 real + pad).
    x = jax.random.normal(kx, (2, 1, INPUT_CH, INPUT_TIME), jnp.float32)
    out = jax.block_until_ready(eegnet_forward(x, kparams))
    ref = reference_forward(x, raw)
    # bf16 MXU operands (f32 accumulate) => relaxed tolerance vs. the f32 reference.
    np.testing.assert_allclose(np.asarray(out), np.asarray(ref), rtol=2e-2, atol=2e-2)

    # Exercise the batched path: grid of 2 parallel blocks + batch padding.
    x2 = jax.random.normal(jax.random.PRNGKey(1), (10, 1, INPUT_CH, INPUT_TIME),
                           jnp.float32)
    out2 = jax.block_until_ready(eegnet_forward(x2, kparams))
    ref2 = reference_forward(x2, raw)
    np.testing.assert_allclose(np.asarray(out2), np.asarray(ref2), rtol=2e-2, atol=2e-2)

    print("KERNEL_OK")
</pallas_src>

<mosaic_0001>
module attributes {stable_mosaic.version = 11 : i64} {
  func.func @eegnet_kernel(%arg0: i32, %arg1: memref<256x512xbf16, #tpu.memory_space<vmem>>, %arg2: memref<16x256xbf16, #tpu.memory_space<vmem>>, %arg3: memref<512x128xbf16, #tpu.memory_space<vmem>>, %arg4: memref<16x16x128xf32, #tpu.memory_space<vmem>>, %arg5: memref<16x16xbf16, #tpu.memory_space<vmem>>, %arg6: memref<2x128x8xf32, #tpu.memory_space<vmem>>, %arg7: memref<2x4x16xf32, #tpu.memory_space<vmem>>, %arg8: memref<16x3xf32, #tpu.memory_space<vmem>>, %arg9: memref<1x4x8xf32, #tpu.memory_space<vmem>>) attributes {dimension_semantics = [#tpu.dimension_semantics<parallel>], iteration_bounds = array<i64: 1>, scalar_prefetch = 0 : i64, scratch_operands = 0 : i64, tpu.core_type = #tpu.core_type<tc>, window_params = [{transform_indices = @transform_0, window_bounds = array<i64: 256, 512>}, {pipeline_mode = #tpu.pipeline_mode<synchronous>, transform_indices = @transform_1, window_bounds = array<i64: 16, 256>}, {pipeline_mode = #tpu.pipeline_mode<synchronous>, transform_indices = @transform_2, window_bounds = array<i64: 512, 128>}, {pipeline_mode = #tpu.pipeline_mode<synchronous>, transform_indices = @transform_3, window_bounds = array<i64: 16, 16, 128>}, {pipeline_mode = #tpu.pipeline_mode<synchronous>, transform_indices = @transform_4, window_bounds = array<i64: 16, 16>}, {pipeline_mode = #tpu.pipeline_mode<synchronous>, transform_indices = @transform_5, window_bounds = array<i64: 2, 128, 8>}, {pipeline_mode = #tpu.pipeline_mode<synchronous>, transform_indices = @transform_6, window_bounds = array<i64: 2, 4, 16>}, {pipeline_mode = #tpu.pipeline_mode<synchronous>, transform_indices = @transform_7, window_bounds = array<i64: 16, 3>}, {transform_indices = @transform_8, window_bounds = array<i64: 1, 4, 8>}]} {
    %c0 = arith.constant 0 : index
    %c0_0 = arith.constant 0 : index
    %0 = vector.load %arg8[%c0, %c0_0] : memref<16x3xf32, #tpu.memory_space<vmem>>, vector<16x3xf32>
    %1 = vector.extract_strided_slice %0 {offsets = [0, 0], sizes = [16, 1], strides = [1, 1]} : vector<16x3xf32> to vector<16x1xf32>
    %2 = vector.extract_strided_slice %0 {offsets = [0, 1], sizes = [16, 1], strides = [1, 1]} : vector<16x3xf32> to vector<16x1xf32>
    %3 = vector.extract_strided_slice %0 {offsets = [0, 2], sizes = [4, 1], strides = [1, 1]} : vector<16x3xf32> to vector<4x1xf32>
    %c0_1 = arith.constant 0 : index
    %c0_2 = arith.constant 0 : index
    %4 = vector.load %arg2[%c0_1, %c0_2] : memref<16x256xbf16, #tpu.memory_space<vmem>>, vector<16x256xbf16>
    %c0_3 = arith.constant 0 : index
    %c0_4 = arith.constant 0 : index
    %5 = vector.load %arg1[%c0_3, %c0_4] : memref<256x512xbf16, #tpu.memory_space<vmem>>, vector<256x512xbf16>
    %cst = arith.constant dense<0.000000e+00> : vector<16x512xf32>
    %6 = tpu.matmul %4, %5, %cst {dimension_numbers = #tpu.dot_dimension_numbers<[1], [0], [0], [1], [0, 0, 1, 1], [], []>} : vector<16x256xbf16>, vector<256x512xbf16>, vector<16x512xf32> -> vector<16x512xf32>
    %7 = vector.broadcast %1 : vector<16x1xf32> to vector<16x512xf32>
    %8 = arith.addf %6, %7 : vector<16x512xf32>
    %cst_5 = arith.constant 0.000000e+00 : f32
    %9 = vector.broadcast %cst_5 : f32 to vector<16x512xf32>
    %10 = arith.cmpf ogt, %8, %9 : vector<16x512xf32>
    %cst_6 = arith.constant 0.000000e+00 : f32
    %11 = vector.broadcast %cst_6 : f32 to vector<16x512xf32>
    %12 = arith.minimumf %8, %11 : vector<16x512xf32>
    %13 = math.exp %12 : vector<16x512xf32>
    %cst_7 = arith.constant 1.000000e+00 : f32
    %14 = vector.broadcast %cst_7 : f32 to vector<16x512xf32>
    %15 = arith.subf %13, %14 : vector<16x512xf32>
    %16 = arith.select %10, %8, %15 : vector<16x512xi1>, vector<16x512xf32>
    %17 = arith.truncf %16 : vector<16x512xf32> to vector<16x512xbf16>
    %c0_8 = arith.constant 0 : index
    %c0_9 = arith.constant 0 : index
    %18 = vector.load %arg3[%c0_8, %c0_9] : memref<512x128xbf16, #tpu.memory_space<vmem>>, vector<512x128xbf16>
    %cst_10 = arith.constant dense<0.000000e+00> : vector<16x128xf32>
    %19 = tpu.matmul %17, %18, %cst_10 {dimension_numbers = #tpu.dot_dimension_numbers<[1], [0], [0], [1], [0, 0, 1, 1], [], []>} : vector<16x512xbf16>, vector<512x128xbf16>, vector<16x128xf32> -> vector<16x128xf32>
    %c7_i32 = arith.constant 7 : i32
    %20 = tpu.dynamic_rotate %19 by %c7_i32 dim 1 : vector<16x128xf32>, i32 -> vector<16x128xf32>
    %c0_11 = arith.constant 0 : index
    %c0_12 = arith.constant 0 : index
    %c0_13 = arith.constant 0 : index
    %21 = vector.load %arg4[%c0_11, %c0_12, %c0_13] : memref<16x16x128xf32, #tpu.memory_space<vmem>>, vector<1x16x128xf32>
    %22 = vector.shape_cast %21 : vector<1x16x128xf32> to vector<16x128xf32>
    %23 = arith.mulf %22, %20 : vector<16x128xf32>
    %c6_i32 = arith.constant 6 : i32
    %24 = tpu.dynamic_rotate %19 by %c6_i32 dim 1 : vector<16x128xf32>, i32 -> vector<16x128xf32>
    %c1 = arith.constant 1 : index
    %c0_14 = arith.constant 0 : index
    %c0_15 = arith.constant 0 : index
    %25 = vector.load %arg4[%c1, %c0_14, %c0_15] : memref<16x16x128xf32, #tpu.memory_space<vmem>>, vector<1x16x128xf32>
    %26 = vector.shape_cast %25 : vector<1x16x128xf32> to vector<16x128xf32>
    %27 = arith.mulf %26, %24 : vector<16x128xf32>
    %28 = arith.addf %23, %27 : vector<16x128xf32>
    %c5_i32 = arith.constant 5 : i32
    %29 = tpu.dynamic_rotate %19 by %c5_i32 dim 1 : vector<16x128xf32>, i32 -> vector<16x128xf32>
    %c2 = arith.constant 2 : index
    %c0_16 = arith.constant 0 : index
    %c0_17 = arith.constant 0 : index
    %30 = vector.load %arg4[%c2, %c0_16, %c0_17] : memref<16x16x128xf32, #tpu.memory_space<vmem>>, vector<1x16x128xf32>
    %31 = vector.shape_cast %30 : vector<1x16x128xf32> to vector<16x128xf32>
    %32 = arith.mulf %31, %29 : vector<16x128xf32>
    %33 = arith.addf %28, %32 : vector<16x128xf32>
    %c4_i32 = arith.constant 4 : i32
    %34 = tpu.dynamic_rotate %19 by %c4_i32 dim 1 : vector<16x128xf32>, i32 -> vector<16x128xf32>
    %c3 = arith.constant 3 : index
    %c0_18 = arith.constant 0 : index
    %c0_19 = arith.constant 0 : index
    %35 = vector.load %arg4[%c3, %c0_18, %c0_19] : memref<16x16x128xf32, #tpu.memory_space<vmem>>, vector<1x16x128xf32>
    %36 = vector.shape_cast %35 : vector<1x16x128xf32> to vector<16x128xf32>
    %37 = arith.mulf %36, %34 : vector<16x128xf32>
    %38 = arith.addf %33, %37 : vector<16x128xf32>
    %c3_i32 = arith.constant 3 : i32
    %39 = tpu.dynamic_rotate %19 by %c3_i32 dim 1 : vector<16x128xf32>, i32 -> vector<16x128xf32>
    %c4 = arith.constant 4 : index
    %c0_20 = arith.constant 0 : index
    %c0_21 = arith.constant 0 : index
    %40 = vector.load %arg4[%c4, %c0_20, %c0_21] : memref<16x16x128xf32, #tpu.memory_space<vmem>>, vector<1x16x128xf32>
    %41 = vector.shape_cast %40 : vector<1x16x128xf32> to vector<16x128xf32>
    %42 = arith.mulf %41, %39 : vector<16x128xf32>
    %c2_i32 = arith.constant 2 : i32
    %43 = tpu.dynamic_rotate %19 by %c2_i32 dim 1 : vector<16x128xf32>, i32 -> vector<16x128xf32>
    %c5 = arith.constant 5 : index
    %c0_22 = arith.constant 0 : index
    %c0_23 = arith.constant 0 : index
    %44 = vector.load %arg4[%c5, %c0_22, %c0_23] : memref<16x16x128xf32, #tpu.memory_space<vmem>>, vector<1x16x128xf32>
    %45 = vector.shape_cast %44 : vector<1x16x128xf32> to vector<16x128xf32>
    %46 = arith.mulf %45, %43 : vector<16x128xf32>
    %47 = arith.addf %42, %46 : vector<16x128xf32>
    %c1_i32 = arith.constant 1 : i32
    %48 = tpu.dynamic_rotate %19 by %c1_i32 dim 1 : vector<16x128xf32>, i32 -> vector<16x128xf32>
    %c6 = arith.constant 6 : index
    %c0_24 = arith.constant 0 : index
    %c0_25 = arith.constant 0 : index
    %49 = vector.load %arg4[%c6, %c0_24, %c0_25] : memref<16x16x128xf32, #tpu.memory_space<vmem>>, vector<1x16x128xf32>
    %50 = vector.shape_cast %49 : vector<1x16x128xf32> to vector<16x128xf32>
    %51 = arith.mulf %50, %48 : vector<16x128xf32>
    %52 = arith.addf %47, %51 : vector<16x128xf32>
    %c7 = arith.constant 7 : index
    %c0_26 = arith.constant 0 : index
    %c0_27 = arith.constant 0 : index
    %53 = vector.load %arg4[%c7, %c0_26, %c0_27] : memref<16x16x128xf32, #tpu.memory_space<vmem>>, vector<1x16x128xf32>
    %54 = vector.shape_cast %53 : vector<1x16x128xf32> to vector<16x128xf32>
    %55 = arith.mulf %54, %19 : vector<16x128xf32>
    %56 = arith.addf %52, %55 : vector<16x128xf32>
    %c127_i32 = arith.constant 127 : i32
    %57 = tpu.dynamic_rotate %19 by %c127_i32 dim 1 : vector<16x128xf32>, i32 -> vector<16x128xf32>
    %c8 = arith.constant 8 : index
    %c0_28 = arith.constant 0 : index
    %c0_29 = arith.constant 0 : index
    %58 = vector.load %arg4[%c8, %c0_28, %c0_29] : memref<16x16x128xf32, #tpu.memory_space<vmem>>, vector<1x16x128xf32>
    %59 = vector.shape_cast %58 : vector<1x16x128xf32> to vector<16x128xf32>
    %60 = arith.mulf %59, %57 : vector<16x128xf32>
    %c126_i32 = arith.constant 126 : i32
    %61 = tpu.dynamic_rotate %19 by %c126_i32 dim 1 : vector<16x128xf32>, i32 -> vector<16x128xf32>
    %c9 = arith.constant 9 : index
    %c0_30 = arith.constant 0 : index
    %c0_31 = arith.constant 0 : index
    %62 = vector.load %arg4[%c9, %c0_30, %c0_31] : memref<16x16x128xf32, #tpu.memory_space<vmem>>, vector<1x16x128xf32>
    %63 = vector.shape_cast %62 : vector<1x16x128xf32> to vector<16x128xf32>
    %64 = arith.mulf %63, %61 : vector<16x128xf32>
    %65 = arith.addf %60, %64 : vector<16x128xf32>
    %c125_i32 = arith.constant 125 : i32
    %66 = tpu.dynamic_rotate %19 by %c125_i32 dim 1 : vector<16x128xf32>, i32 -> vector<16x128xf32>
    %c10 = arith.constant 10 : index
    %c0_32 = arith.constant 0 : index
    %c0_33 = arith.constant 0 : index
    %67 = vector.load %arg4[%c10, %c0_32, %c0_33] : memref<16x16x128xf32, #tpu.memory_space<vmem>>, vector<1x16x128xf32>
    %68 = vector.shape_cast %67 : vector<1x16x128xf32> to vector<16x128xf32>
    %69 = arith.mulf %68, %66 : vector<16x128xf32>
    %70 = arith.addf %65, %69 : vector<16x128xf32>
    %c124_i32 = arith.constant 124 : i32
    %71 = tpu.dynamic_rotate %19 by %c124_i32 dim 1 : vector<16x128xf32>, i32 -> vector<16x128xf32>
    %c11 = arith.constant 11 : index
    %c0_34 = arith.constant 0 : index
    %c0_35 = arith.constant 0 : index
    %72 = vector.load %arg4[%c11, %c0_34, %c0_35] : memref<16x16x128xf32, #tpu.memory_space<vmem>>, vector<1x16x128xf32>
    %73 = vector.shape_cast %72 : vector<1x16x128xf32> to vector<16x128xf32>
    %74 = arith.mulf %73, %71 : vector<16x128xf32>
    %75 = arith.addf %70, %74 : vector<16x128xf32>
    %c123_i32 = arith.constant 123 : i32
    %76 = tpu.dynamic_rotate %19 by %c123_i32 dim 1 : vector<16x128xf32>, i32 -> vector<16x128xf32>
    %c12 = arith.constant 12 : index
    %c0_36 = arith.constant 0 : index
    %c0_37 = arith.constant 0 : index
    %77 = vector.load %arg4[%c12, %c0_36, %c0_37] : memref<16x16x128xf32, #tpu.memory_space<vmem>>, vector<1x16x128xf32>
    %78 = vector.shape_cast %77 : vector<1x16x128xf32> to vector<16x128xf32>
    %79 = arith.mulf %78, %76 : vector<16x128xf32>
    %c122_i32 = arith.constant 122 : i32
    %80 = tpu.dynamic_rotate %19 by %c122_i32 dim 1 : vector<16x128xf32>, i32 -> vector<16x128xf32>
    %c13 = arith.constant 13 : index
    %c0_38 = arith.constant 0 : index
    %c0_39 = arith.constant 0 : index
    %81 = vector.load %arg4[%c13, %c0_38, %c0_39] : memref<16x16x128xf32, #tpu.memory_space<vmem>>, vector<1x16x128xf32>
    %82 = vector.shape_cast %81 : vector<1x16x128xf32> to vector<16x128xf32>
    %83 = arith.mulf %82, %80 : vector<16x128xf32>
    %84 = arith.addf %79, %83 : vector<16x128xf32>
    %c121_i32 = arith.constant 121 : i32
    %85 = tpu.dynamic_rotate %19 by %c121_i32 dim 1 : vector<16x128xf32>, i32 -> vector<16x128xf32>
    %c14 = arith.constant 14 : index
    %c0_40 = arith.constant 0 : index
    %c0_41 = arith.constant 0 : index
    %86 = vector.load %arg4[%c14, %c0_40, %c0_41] : memref<16x16x128xf32, #tpu.memory_space<vmem>>, vector<1x16x128xf32>
    %87 = vector.shape_cast %86 : vector<1x16x128xf32> to vector<16x128xf32>
    %88 = arith.mulf %87, %85 : vector<16x128xf32>
    %89 = arith.addf %84, %88 : vector<16x128xf32>
    %c120_i32 = arith.constant 120 : i32
    %90 = tpu.dynamic_rotate %19 by %c120_i32 dim 1 : vector<16x128xf32>, i32 -> vector<16x128xf32>
    %c15 = arith.constant 15 : index
    %c0_42 = arith.constant 0 : index
    %c0_43 = arith.constant 0 : index
    %91 = vector.load %arg4[%c15, %c0_42, %c0_43] : memref<16x16x128xf32, #tpu.memory_space<vmem>>, vector<1x16x128xf32>
    %92 = vector.shape_cast %91 : vector<1x16x128xf32> to vector<16x128xf32>
    %93 = arith.mulf %92, %90 : vector<16x128xf32>
    %94 = arith.addf %89, %93 : vector<16x128xf32>
    %95 = arith.addf %38, %56 : vector<16x128xf32>
    %96 = arith.addf %75, %94 : vector<16x128xf32>
    %97 = arith.addf %95, %96 : vector<16x128xf32>
    %c0_44 = arith.constant 0 : index
    %c0_45 = arith.constant 0 : index
    %98 = vector.load %arg5[%c0_44, %c0_45] : memref<16x16xbf16, #tpu.memory_space<vmem>>, vector<16x16xbf16>
    %99 = arith.truncf %97 : vector<16x128xf32> to vector<16x128xbf16>
    %cst_46 = arith.constant dense<0.000000e+00> : vector<16x128xf32>
    %100 = tpu.matmul %98, %99, %cst_46 {dimension_numbers = #tpu.dot_dimension_numbers<[1], [0], [0], [1], [0, 0, 1, 1], [], []>} : vector<16x16xbf16>, vector<16x128xbf16>, vector<16x128xf32> -> vector<16x128xf32>
    %101 = vector.broadcast %2 : vector<16x1xf32> to vector<16x128xf32>
    %102 = arith.addf %100, %101 : vector<16x128xf32>
    %cst_47 = arith.constant 0.000000e+00 : f32
    %103 = vector.broadcast %cst_47 : f32 to vector<16x128xf32>
    %104 = arith.cmpf ogt, %102, %103 : vector<16x128xf32>
    %cst_48 = arith.constant 0.000000e+00 : f32
    %105 = vector.broadcast %cst_48 : f32 to vector<16x128xf32>
    %106 = arith.minimumf %102, %105 : vector<16x128xf32>
    %107 = math.exp %106 : vector<16x128xf32>
    %cst_49 = arith.constant 1.000000e+00 : f32
    %108 = vector.broadcast %cst_49 : f32 to vector<16x128xf32>
    %109 = arith.subf %107, %108 : vector<16x128xf32>
    %110 = arith.select %104, %102, %109 : vector<16x128xi1>, vector<16x128xf32>
    %c0_50 = arith.constant 0 : index
    %c0_51 = arith.constant 0 : index
    %c0_52 = arith.constant 0 : index
    %111 = vector.load %arg6[%c0_50, %c0_51, %c0_52] : memref<2x128x8xf32, #tpu.memory_space<vmem>>, vector<1x128x8xf32>
    %112 = vector.shape_cast %111 : vector<1x128x8xf32> to vector<128x8xf32>
    %cst_53 = arith.constant dense<0.000000e+00> : vector<16x8xf32>
    %113 = tpu.matmul %110, %112, %cst_53 {dimension_numbers = #tpu.dot_dimension_numbers<[1], [0], [0], [1], [0, 0, 1, 1], [], []>} : vector<16x128xf32>, vector<128x8xf32>, vector<16x8xf32> -> vector<16x8xf32>
    %c0_54 = arith.constant 0 : index
    %c0_55 = arith.constant 0 : index
    %c0_56 = arith.constant 0 : index
    %114 = vector.load %arg7[%c0_54, %c0_55, %c0_56] : memref<2x4x16xf32, #tpu.memory_space<vmem>>, vector<1x4x16xf32>
    %115 = vector.shape_cast %114 : vector<1x4x16xf32> to vector<4x16xf32>
    %cst_57 = arith.constant dense<0.000000e+00> : vector<4x8xf32>
    %116 = tpu.matmul %115, %113, %cst_57 {dimension_numbers = #tpu.dot_dimension_numbers<[1], [0], [0], [1], [0, 0, 1, 1], [], []>} : vector<4x16xf32>, vector<16x8xf32>, vector<4x8xf32> -> vector<4x8xf32>
    %117 = vector.broadcast %3 : vector<4x1xf32> to vector<4x8xf32>
    %118 = arith.addf %117, %116 : vector<4x8xf32>
    %c1_58 = arith.constant 1 : index
    %c0_59 = arith.constant 0 : index
    %c0_60 = arith.constant 0 : index
    %119 = vector.load %arg6[%c1_58, %c0_59, %c0_60] : memref<2x128x8xf32, #tpu.memory_space<vmem>>, vector<1x128x8xf32>
    %120 = vector.shape_cast %119 : vector<1x128x8xf32> to vector<128x8xf32>
    %cst_61 = arith.constant dense<0.000000e+00> : vector<16x8xf32>
    %121 = tpu.matmul %110, %120, %cst_61 {dimension_numbers = #tpu.dot_dimension_numbers<[1], [0], [0], [1], [0, 0, 1, 1], [], []>} : vector<16x128xf32>, vector<128x8xf32>, vector<16x8xf32> -> vector<16x8xf32>
    %c1_62 = arith.constant 1 : index
    %c0_63 = arith.constant 0 : index
    %c0_64 = arith.constant 0 : index
    %122 = vector.load %arg7[%c1_62, %c0_63, %c0_64] : memref<2x4x16xf32, #tpu.memory_space<vmem>>, vector<1x4x16xf32>
    %123 = vector.shape_cast %122 : vector<1x4x16xf32> to vector<4x16xf32>
    %cst_65 = arith.constant dense<0.000000e+00> : vector<4x8xf32>
    %124 = tpu.matmul %123, %121, %cst_65 {dimension_numbers = #tpu.dot_dimension_numbers<[1], [0], [0], [1], [0, 0, 1, 1], [], []>} : vector<4x16xf32>, vector<16x8xf32>, vector<4x8xf32> -> vector<4x8xf32>
    %125 = arith.addf %118, %124 : vector<4x8xf32>
    %c0_66 = arith.constant 0 : index
    %c0_67 = arith.constant 0 : index
    %c0_68 = arith.constant 0 : index
    %126 = vector.load %arg9[%c0_66, %c0_67, %c0_68] : memref<1x4x8xf32, #tpu.memory_space<vmem>>, vector<1x4x8xf32>
    %127 = vector.shape_cast %126 : vector<1x4x8xf32> to vector<4x8xf32>
    %128 = vector.shape_cast %125 : vector<4x8xf32> to vector<1x4x8xf32>
    tpu.vector_store %arg9[%c0_66, %c0_67, %c0_68], %128 {strides = array<i32>} : memref<1x4x8xf32, #tpu.memory_space<vmem>>, vector<1x4x8xf32>,
    return
  }
  func.func @transform_0(%arg0: i32) -> (i32, i32) {
    %c0_i32 = arith.constant 0 : i32
    %c0_i32_0 = arith.constant 0 : i32
    return %c0_i32, %arg0 : i32, i32
  }
  func.func @transform_1(%arg0: i32) -> (i32, i32) {
    %c0_i32 = arith.constant 0 : i32
    %c0_i32_0 = arith.constant 0 : i32
    %c0_i32_1 = arith.constant 0 : i32
    return %c0_i32, %c0_i32_0 : i32, i32
  }
  func.func @transform_2(%arg0: i32) -> (i32, i32) {
    %c0_i32 = arith.constant 0 : i32
    %c0_i32_0 = arith.constant 0 : i32
    %c0_i32_1 = arith.constant 0 : i32
    return %c0_i32, %c0_i32_0 : i32, i32
  }
  func.func @transform_3(%arg0: i32) -> (i32, i32, i32) {
    %c0_i32 = arith.constant 0 : i32
    %c0_i32_0 = arith.constant 0 : i32
    %c0_i32_1 = arith.constant 0 : i32
    %c0_i32_2 = arith.constant 0 : i32
    return %c0_i32, %c0_i32_0, %c0_i32_1 : i32, i32, i32
  }
  func.func @transform_4(%arg0: i32) -> (i32, i32) {
    %c0_i32 = arith.constant 0 : i32
    %c0_i32_0 = arith.constant 0 : i32
    %c0_i32_1 = arith.constant 0 : i32
    return %c0_i32, %c0_i32_0 : i32, i32
  }
  func.func @transform_5(%arg0: i32) -> (i32, i32, i32) {
    %c0_i32 = arith.constant 0 : i32
    %c0_i32_0 = arith.constant 0 : i32
    %c0_i32_1 = arith.constant 0 : i32
    %c0_i32_2 = arith.constant 0 : i32
    return %c0_i32, %c0_i32_0, %c0_i32_1 : i32, i32, i32
  }
  func.func @transform_6(%arg0: i32) -> (i32, i32, i32) {
    %c0_i32 = arith.constant 0 : i32
    %c0_i32_0 = arith.constant 0 : i32
    %c0_i32_1 = arith.constant 0 : i32
    %c0_i32_2 = arith.constant 0 : i32
    return %c0_i32, %c0_i32_0, %c0_i32_1 : i32, i32, i32
  }
  func.func @transform_7(%arg0: i32) -> (i32, i32) {
    %c0_i32 = arith.constant 0 : i32
    %c0_i32_0 = arith.constant 0 : i32
    %c0_i32_1 = arith.constant 0 : i32
    return %c0_i32, %c0_i32_0 : i32, i32
  }
  func.func @transform_8(%arg0: i32) -> (i32, i32, i32) {
    %c0_i32 = arith.constant 0 : i32
    %c0_i32_0 = arith.constant 0 : i32
    %c0_i32_1 = arith.constant 0 : i32
    return %arg0, %c0_i32, %c0_i32_0 : i32, i32, i32
  }
}

</mosaic_0001>

<llo_original>
// kernel: eegnet_forward.1
$region0: #{eegnet_forward.1}
  #allocation0 [shape = 'u32[]', space=smem, size = 0x4, offset = 0x4, fixed_abs, tag = 'smem constant byte address 0x4 - core index']
  #allocation1 [shape = 'u32[144,128]{1,0:T(1,128)}', space=vmem, size = 0x12000, scoped, tag = 'internal scratch']
  %s0 = inlined_call_operand.vmem [shape: bf16[256,512], index: 0, kind: input, shape index: {}]
  %s1 = inlined_call_operand.vmem [shape: bf16[16,256], index: 1, kind: input, shape index: {}]
  %s2 = inlined_call_operand.vmem [shape: bf16[512,128], index: 2, kind: input, shape index: {}]
  %s3 = inlined_call_operand.vmem [shape: f32[16,16,128], index: 3, kind: input, shape index: {}]
  %s4 = inlined_call_operand.vmem [shape: bf16[16,16], index: 4, kind: input, shape index: {}]
  %s5 = inlined_call_operand.vmem [shape: f32[2,128,8], index: 5, kind: input, shape index: {}]
  %s6 = inlined_call_operand.vmem [shape: f32[2,4,16], index: 6, kind: input, shape index: {}]
  %s7 = inlined_call_operand.vmem [shape: f32[16,3], index: 7, kind: input, shape index: {}]
  %s8 = inlined_call_operand.vmem [shape: f32[1,4,8], index: 8, kind: output, shape index: {}]
  %s9 = sld [smem:[#allocation0]]
  $region42: #{eegnet_forward.1} parent=0
    _
  %s11 = ssub.s32 1, %s9
  %s12 = scalar_select 0, %s11, %s9
  // Predicated region
  $region2: #{eegnet_forward.1} parent=0 // pred_check
    _
  $region3: #{eegnet_forward.1} parent=0 // pred_check_branch
    %14 = sbr.rel (0) target = $region5
  $region4: #{eegnet_forward.1} parent=0 // pred_region
    _
  $region5: #{eegnet_forward.1} parent=0 // pred_fallthru
    _
  // Predicated region
  $region6: #{eegnet_forward.1} parent=0 // pred_check
    _
  $region7: #{eegnet_forward.1} parent=0 // pred_check_branch
    %16 = sbr.rel (0) target = $region9
  $region8: #{eegnet_forward.1} parent=0 // pred_region
    _
  $region9: #{eegnet_forward.1} parent=0 // pred_fallthru
    _
  // Predicated region
  $region10: #{eegnet_forward.1} parent=0 // pred_check
    _
  $region11: #{eegnet_forward.1} parent=0 // pred_check_branch
    %18 = sbr.rel (0) target = $region13
  $region12: #{eegnet_forward.1} parent=0 // pred_region
    _
  $region13: #{eegnet_forward.1} parent=0 // pred_fallthru
    _
  // Predicated region
  $region14: #{eegnet_forward.1} parent=0 // pred_check
    _
  $region15: #{eegnet_forward.1} parent=0 // pred_check_branch
    %20 = sbr.rel (0) target = $region17
  $region16: #{eegnet_forward.1} parent=0 // pred_region
    _
  $region17: #{eegnet_forward.1} parent=0 // pred_fallthru
    _
  // Predicated region
  $region18: #{eegnet_forward.1} parent=0 // pred_check
    _
  $region19: #{eegnet_forward.1} parent=0 // pred_check_branch
    %22 = sbr.rel (0) target = $region21
  $region20: #{eegnet_forward.1} parent=0 // pred_region
    _
  $region21: #{eegnet_forward.1} parent=0 // pred_fallthru
    _
  // Predicated region
  $region22: #{eegnet_forward.1} parent=0 // pred_check
    _
  $region23: #{eegnet_forward.1} parent=0 // pred_check_branch
    %24 = sbr.rel (0) target = $region25
  $region24: #{eegnet_forward.1} parent=0 // pred_region
    _
  $region25: #{eegnet_forward.1} parent=0 // pred_fallthru
    _
  // Predicated region
  $region26: #{eegnet_forward.1} parent=0 // pred_check
    _
  $region27: #{eegnet_forward.1} parent=0 // pred_check_branch
    %26 = sbr.rel (0) target = $region29
  $region28: #{eegnet_forward.1} parent=0 // pred_region
    _
  $region29: #{eegnet_forward.1} parent=0 // pred_fallthru
    _
  // Predicated region
  $region30: #{eegnet_forward.1} parent=0 // pred_check
    _
  $region31: #{eegnet_forward.1} parent=0 // pred_check_branch
    %28 = sbr.rel (0) target = $region33
  $region32: #{eegnet_forward.1} parent=0 // pred_region
    _
  $region33: #{eegnet_forward.1} parent=0 // pred_fallthru
    _
  %v30 = vld [vmem:[%s7] sm:$0xff]
  %v31 = vld [vmem:[%s7 + $0x8] sm:$0xff]
  %v32 = vld [vmem:[%s1] sm:$0xff]
  %v33 = vld [vmem:[%s1 + $0x8] sm:$0xff]
  %v34 = vld [vmem:[%s0] sm:$0xff]
  %v35 = vld [vmem:[%s0 + $0x8] sm:$0xff]
  %v36 = vld [vmem:[%s0 + $0x10] sm:$0xff]
  %v37 = vld [vmem:[%s0 + $0x18] sm:$0xff]
  %v38 = vld [vmem:[%s0 + $0x20] sm:$0xff]
  %v39 = vld [vmem:[%s0 + $0x28] sm:$0xff]
  %v40 = vld [vmem:[%s0 + $0x30] sm:$0xff]
  %v41 = vld [vmem:[%s0 + $0x38] sm:$0xff]
  %v42 = vld [vmem:[%s0 + $0x40] sm:$0xff]
  %v43 = vld [vmem:[%s0 + $0x48] sm:$0xff]
  %v44 = vld [vmem:[%s0 + $0x50] sm:$0xff]
  %v45 = vld [vmem:[%s0 + $0x58] sm:$0xff]
  %v46 = vld [vmem:[%s0 + $0x60] sm:$0xff]
  %v47 = vld [vmem:[%s0 + $0x68] sm:$0xff]
  %v48 = vld [vmem:[%s0 + $0x70] sm:$0xff]
  %v49 = vld [vmem:[%s0 + $0x78] sm:$0xff]
  %v50 = vld [vmem:[%s0 + $0x80] sm:$0xff]
  %v51 = vld [vmem:[%s0 + $0x88] sm:$0xff]
  %v52 = vld [vmem:[%s0 + $0x90] sm:$0xff]
  %v53 = vld [vmem:[%s0 + $0x98] sm:$0xff]
  %v54 = vld [vmem:[%s0 + $0xa0] sm:$0xff]
  %v55 = vld [vmem:[%s0 + $0xa8] sm:$0xff]
  %v56 = vld [vmem:[%s0 + $0xb0] sm:$0xff]
  %v57 = vld [vmem:[%s0 + $0xb8] sm:$0xff]
  %v58 = vld [vmem:[%s0 + $0xc0] sm:$0xff]
  %v59 = vld [vmem:[%s0 + $0xc8] sm:$0xff]
  %v60 = vld [vmem:[%s0 + $0xd0] sm:$0xff]
  %v61 = vld [vmem:[%s0 + $0xd8] sm:$0xff]
  %v62 = vld [vmem:[%s0 + $0xe0] sm:$0xff]
  %v63 = vld [vmem:[%s0 + $0xe8] sm:$0xff]
  %v64 = vld [vmem:[%s0 + $0xf0] sm:$0xff]
  %v65 = vld [vmem:[%s0 + $0xf8] sm:$0xff]
  %v66 = vld [vmem:[%s0 + $0x100] sm:$0xff]
  %v67 = vld [vmem:[%s0 + $0x108] sm:$0xff]
  %v68 = vld [vmem:[%s0 + $0x110] sm:$0xff]
  %v69 = vld [vmem:[%s0 + $0x118] sm:$0xff]
  %v70 = vld [vmem:[%s0 + $0x120] sm:$0xff]
  %v71 = vld [vmem:[%s0 + $0x128] sm:$0xff]
  %v72 = vld [vmem:[%s0 + $0x130] sm:$0xff]
  %v73 = vld [vmem:[%s0 + $0x138] sm:$0xff]
  %v74 = vld [vmem:[%s0 + $0x140] sm:$0xff]
  %v75 = vld [vmem:[%s0 + $0x148] sm:$0xff]
  %v76 = vld [vmem:[%s0 + $0x150] sm:$0xff]
  %v77 = vld [vmem:[%s0 + $0x158] sm:$0xff]
  %v78 = vld [vmem:[%s0 + $0x160] sm:$0xff]
  %v79 = vld [vmem:[%s0 + $0x168] sm:$0xff]
  %v80 = vld [vmem:[%s0 + $0x170] sm:$0xff]
  %v81 = vld [vmem:[%s0 + $0x178] sm:$0xff]
  %v82 = vld [vmem:[%s0 + $0x180] sm:$0xff]
  %v83 = vld [vmem:[%s0 + $0x188] sm:$0xff]
  %v84 = vld [vmem:[%s0 + $0x190] sm:$0xff]
  %v85 = vld [vmem:[%s0 + $0x198] sm:$0xff]
  %v86 = vld [vmem:[%s0 + $0x1a0] sm:$0xff]
  %v87 = vld [vmem:[%s0 + $0x1a8] sm:$0xff]
  %v88 = vld [vmem:[%s0 + $0x1b0] sm:$0xff]
  %v89 = vld [vmem:[%s0 + $0x1b8] sm:$0xff]
  %v90 = vld [vmem:[%s0 + $0x1c0] sm:$0xff]
  %v91 = vld [vmem:[%s0 + $0x1c8] sm:$0xff]
  %v92 = vld [vmem:[%s0 + $0x1d0] sm:$0xff]
  %v93 = vld [vmem:[%s0 + $0x1d8] sm:$0xff]
  %v94 = vld [vmem:[%s0 + $0x1e0] sm:$0xff]
  %v95 = vld [vmem:[%s0 + $0x1e8] sm:$0xff]
  %v96 = vld [vmem:[%s0 + $0x1f0] sm:$0xff]
  %v97 = vld [vmem:[%s0 + $0x1f8] sm:$0xff]
  %99 = vset.pattern.permute.xlu0 0
  %100 = vperm.xlu0 %99, %v30
  %v101 = vpop.permute.xlu0 %100
  %104 = vset.pattern.permute.xlu0 0
  %105 = vperm.xlu0 %104, %v31
  %v106 = vpop.permute.xlu0 %105
  %v110 = vunpack.c.l.b16 %v32
  %v111 = vunpack.c.h.b16 %v32
  %v112 = vunpack.c.l.b16 %v33
  %v113 = vunpack.c.h.b16 %v33
  %v114 = vpack.c.b16 %v112, %v110
  %v115 = vpack.c.b16 %v113, %v111
  %v182 = vunpack.c.l.b16 %v34
  %v183 = vunpack.c.h.b16 %v34
  %v184 = vunpack.c.l.b16 %v35
  %v185 = vunpack.c.h.b16 %v35
  %v186 = vunpack.c.l.b16 %v36
  %v187 = vunpack.c.h.b16 %v36
  %v188 = vunpack.c.l.b16 %v37
  %v189 = vunpack.c.h.b16 %v37
  %v190 = vunpack.c.l.b16 %v38
  %v191 = vunpack.c.h.b16 %v38
  %v192 = vunpack.c.l.b16 %v39
  %v193 = vunpack.c.h.b16 %v39
  %v194 = vunpack.c.l.b16 %v40
  %v195 = vunpack.c.h.b16 %v40
  %v196 = vunpack.c.l.b16 %v41
  %v197 = vunpack.c.h.b16 %v41
  %v198 = vunpack.c.l.b16 %v42
  %v199 = vunpack.c.h.b16 %v42
  %v200 = vunpack.c.l.b16 %v43
  %v201 = vunpack.c.h.b16 %v43
  %v202 = vunpack.c.l.b16 %v44
  %v203 = vunpack.c.h.b16 %v44
  %v204 = vunpack.c.l.b16 %v45
  %v205 = vunpack.c.h.b16 %v45
  %v206 = vunpack.c.l.b16 %v46
  %v207 = vunpack.c.h.b16 %v46
  %v208 = vunpack.c.l.b16 %v47
  %v209 = vunpack.c.h.b16 %v47
  %v210 = vunpack.c.l.b16 %v48
  %v211 = vunpack.c.h.b16 %v48
  %v212 = vunpack.c.l.b16 %v49
  %v213 = vunpack.c.h.b16 %v49
  %v214 = vunpack.c.l.b16 %v50
  %v215 = vunpack.c.h.b16 %v50
  %v216 = vunpack.c.l.b16 %v51
  %v217 = vunpack.c.h.b16 %v51
  %v218 = vunpack.c.l.b16 %v52
  %v219 = vunpack.c.h.b16 %v52
  %v220 = vunpack.c.l.b16 %v53
  %v221 = vunpack.c.h.b16 %v53
  %v222 = vunpack.c.l.b16 %v54
  %v223 = vunpack.c.h.b16 %v54
  %v224 = vunpack.c.l.b16 %v55
  %v225 = vunpack.c.h.b16 %v55
  %v226 = vunpack.c.l.b16 %v56
  %v227 = vunpack.c.h.b16 %v56
  %v228 = vunpack.c.l.b16 %v57
  %v229 = vunpack.c.h.b16 %v57
  %v230 = vunpack.c.l.b16 %v58
  %v231 = vunpack.c.h.b16 %v58
  %v232 = vunpack.c.l.b16 %v59
  %v233 = vunpack.c.h.b16 %v59
  %v234 = vunpack.c.l.b16 %v60
  %v235 = vunpack.c.h.b16 %v60
  %v236 = vunpack.c.l.b16 %v61
  %v237 = vunpack.c.h.b16 %v61
  %v238 = vunpack.c.l.b16 %v62
  %v239 = vunpack.c.h.b16 %v62
  %v240 = vunpack.c.l.b16 %v63
  %v241 = vunpack.c.h.b16 %v63
  %v242 = vunpack.c.l.b16 %v64
  %v243 = vunpack.c.h.b16 %v64
  %v244 = vunpack.c.l.b16 %v65
  %v245 = vunpack.c.h.b16 %v65
  %v246 = vunpack.c.l.b16 %v66
  %v247 = vunpack.c.h.b16 %v66
  %v248 = vunpack.c.l.b16 %v67
  %v249 = vunpack.c.h.b16 %v67
  %v250 = vunpack.c.l.b16 %v68
  %v251 = vunpack.c.h.b16 %v68
  %v252 = vunpack.c.l.b16 %v69
  %v253 = vunpack.c.h.b16 %v69
  %v254 = vunpack.c.l.b16 %v70
  %v255 = vunpack.c.h.b16 %v70
  %v256 = vunpack.c.l.b16 %v71
  %v257 = vunpack.c.h.b16 %v71
  %v258 = vunpack.c.l.b16 %v72
  %v259 = vunpack.c.h.b16 %v72
  %v260 = vunpack.c.l.b16 %v73
  %v261 = vunpack.c.h.b16 %v73
  %v262 = vunpack.c.l.b16 %v74
  %v263 = vunpack.c.h.b16 %v74
  %v264 = vunpack.c.l.b16 %v75
  %v265 = vunpack.c.h.b16 %v75
  %v266 = vunpack.c.l.b16 %v76
  %v267 = vunpack.c.h.b16 %v76
  %v268 = vunpack.c.l.b16 %v77
  %v269 = vunpack.c.h.b16 %v77
  %v270 = vunpack.c.l.b16 %v78
  %v271 = vunpack.c.h.b16 %v78
  %v272 = vunpack.c.l.b16 %v79
  %v273 = vunpack.c.h.b16 %v79
  %v274 = vunpack.c.l.b16 %v80
  %v275 = vunpack.c.h.b16 %v80
  %v276 = vunpack.c.l.b16 %v81
  %v277 = vunpack.c.h.b16 %v81
  %v278 = vunpack.c.l.b16 %v82
  %v279 = vunpack.c.h.b16 %v82
  %v280 = vunpack.c.l.b16 %v83
  %v281 = vunpack.c.h.b16 %v83
  %v282 = vunpack.c.l.b16 %v84
  %v283 = vunpack.c.h.b16 %v84
  %v284 = vunpack.c.l.b16 %v85
  %v285 = vunpack.c.h.b16 %v85
  %v286 = vunpack.c.l.b16 %v86
  %v287 = vunpack.c.h.b16 %v86
  %v288 = vunpack.c.l.b16 %v87
  %v289 = vunpack.c.h.b16 %v87
  %v290 = vunpack.c.l.b16 %v88
  %v291 = vunpack.c.h.b16 %v88
  %v292 = vunpack.c.l.b16 %v89
  %v293 = vunpack.c.h.b16 %v89
  %v294 = vunpack.c.l.b16 %v90
  %v295 = vunpack.c.h.b16 %v90
  %v296 = vunpack.c.l.b16 %v91
  %v297 = vunpack.c.h.b16 %v91
  %v298 = vunpack.c.l.b16 %v92
  %v299 = vunpack.c.h.b16 %v92
  %v300 = vunpack.c.l.b16 %v93
  %v301 = vunpack.c.h.b16 %v93
  %v302 = vunpack.c.l.b16 %v94
  %v303 = vunpack.c.h.b16 %v94
  %v304 = vunpack.c.l.b16 %v95
  %v305 = vunpack.c.h.b16 %v95
  %v306 = vunpack.c.l.b16 %v96
  %v307 = vunpack.c.h.b16 %v96
  %v308 = vunpack.c.l.b16 %v97
  %v309 = vunpack.c.h.b16 %v97
  %v310 = vpack.c.b16 %v186, %v182
  %v311 = vpack.c.b16 %v187, %v183
  %v312 = vpack.c.b16 %v188, %v184
  %v313 = vpack.c.b16 %v189, %v185
  %v314 = vpack.c.b16 %v194, %v190
  %v315 = vpack.c.b16 %v195, %v191
  %v316 = vpack.c.b16 %v196, %v192
  %v317 = vpack.c.b16 %v197, %v193
  %v318 = vpack.c.b16 %v202, %v198
  %v319 = vpack.c.b16 %v203, %v199
  %v320 = vpack.c.b16 %v204, %v200
  %v321 = vpack.c.b16 %v205, %v201
  %v322 = vpack.c.b16 %v210, %v206
  %v323 = vpack.c.b16 %v211, %v207
  %v324 = vpack.c.b16 %v212, %v208
  %v325 = vpack.c.b16 %v213, %v209
  %v326 = vpack.c.b16 %v218, %v214
  %v327 = vpack.c.b16 %v219, %v215
  %v328 = vpack.c.b16 %v220, %v216
  %v329 = vpack.c.b16 %v221, %v217
  %v330 = vpack.c.b16 %v226, %v222
  %v331 = vpack.c.b16 %v227, %v223
  %v332 = vpack.c.b16 %v228, %v224
  %v333 = vpack.c.b16 %v229, %v225
  %v334 = vpack.c.b16 %v234, %v230
  %v335 = vpack.c.b16 %v235, %v231
  %v336 = vpack.c.b16 %v236, %v232
  %v337 = vpack.c.b16 %v237, %v233
  %v338 = vpack.c.b16 %v242, %v238
  %v339 = vpack.c.b16 %v243, %v239
  %v340 = vpack.c.b16 %v244, %v240
  %v341 = vpack.c.b16 %v245, %v241
  %v342 = vpack.c.b16 %v250, %v246
  %v343 = vpack.c.b16 %v251, %v247
  %v344 = vpack.c.b16 %v252, %v248
  %v345 = vpack.c.b16 %v253, %v249
  %v346 = vpack.c.b16 %v258, %v254
  %v347 = vpack.c.b16 %v259, %v255
  %v348 = vpack.c.b16 %v260, %v256
  %v349 = vpack.c.b16 %v261, %v257
  %v350 = vpack.c.b16 %v266, %v262
  %v351 = vpack.c.b16 %v267, %v263
  %v352 = vpack.c.b16 %v268, %v264
  %v353 = vpack.c.b16 %v269, %v265
  %v354 = vpack.c.b16 %v274, %v270
  %v355 = vpack.c.b16 %v275, %v271
  %v356 = vpack.c.b16 %v276, %v272
  %v357 = vpack.c.b16 %v277, %v273
  %v358 = vpack.c.b16 %v282, %v278
  %v359 = vpack.c.b16 %v283, %v279
  %v360 = vpack.c.b16 %v284, %v280
  %v361 = vpack.c.b16 %v285, %v281
  %v362 = vpack.c.b16 %v290, %v286
  %v363 = vpack.c.b16 %v291, %v287
  %v364 = vpack.c.b16 %v292, %v288
  %v365 = vpack.c.b16 %v293, %v289
  %v366 = vpack.c.b16 %v298, %v294
  %v367 = vpack.c.b16 %v299, %v295
  %v368 = vpack.c.b16 %v300, %v296
  %v369 = vpack.c.b16 %v301, %v297
  %v370 = vpack.c.b16 %v306, %v302
  %v371 = vpack.c.b16 %v307, %v303
  %v372 = vpack.c.b16 %v308, %v304
  %v373 = vpack.c.b16 %v309, %v305
  %438 = vmatprep.subr.bf16.mxu0 %v311
  %439 = vmatpush1.bf16.msra.mxu0 %v310
  %440 = vmatprep.subr.bf16.mxu0 %v315
  %441 = vmatpush1.bf16.msra.mxu0 %v314
  %442 = vmatprep.subr.bf16.mxu0 %v319
  %443 = vmatpush1.bf16.msra.mxu0 %v318
  %444 = vmatprep.subr.bf16.mxu0 %v323
  %445 = vmatpush1.bf16.msra.mxu0 %v322
  %446 = vmatprep.subr.bf16.mxu0 %v327
  %447 = vmatpush1.bf16.msra.mxu0 %v326
  %448 = vmatprep.subr.bf16.mxu0 %v331
  %449 = vmatpush1.bf16.msra.mxu0 %v330
  %450 = vmatprep.subr.bf16.mxu0 %v335
  %451 = vmatpush1.bf16.msra.mxu0 %v334
  %452 = vmatprep.subr.bf16.mxu0 %v339
  %453 = vmatpush1.bf16.msra.mxu0 %v338
  %454 = vmatprep.subr.bf16.mxu0 %v343
  %455 = vmatpush1.bf16.msra.mxu0 %v342
  %456 = vmatprep.subr.bf16.mxu0 %v347
  %457 = vmatpush1.bf16.msra.mxu0 %v346
  %458 = vmatprep.subr.bf16.mxu0 %v351
  %459 = vmatpush1.bf16.msra.mxu0 %v350
  %460 = vmatprep.subr.bf16.mxu0 %v355
  %461 = vmatpush1.bf16.msra.mxu0 %v354
  %462 = vmatprep.subr.bf16.mxu0 %v359
  %463 = vmatpush1.bf16.msra.mxu0 %v358
  %464 = vmatprep.subr.bf16.mxu0 %v363
  %465 = vmatpush1.bf16.msra.mxu0 %v362
  %466 = vmatprep.subr.bf16.mxu0 %v367
  %467 = vmatpush1.bf16.msra.mxu0 %v366
  %468 = vmatprep.subr.bf16.mxu0 %v371
  %469 = vmatpush1.bf16.msra.mxu0 %v370
  %470 = vmatprep.mubr.bf16.mxu0 %v115
  %471 = vmatmul.mubr.bf16.gmra.mrb[0].mxu0 %v114
  %v472 = vpop.f32.mrb[0].mxu0
  %v473 = vadd.f32 %v101, %v472
  %v474 = vpop.f32.mrb[0].mxu0
  %v475 = vadd.f32 %v101, %v474
  %v476 = vpop.f32.mrb[0].mxu0
  %v477 = vadd.f32 %v106, %v476
  %v478 = vpop.f32.mrb[0].mxu0
  %v479 = vadd.f32 %v106, %v478
  %480 = vdwg.mxu0
  %481 = vmatprep.subr.bf16.mxu0 %v313
  %482 = vmatpush1.bf16.msra.mxu0 %v312
  %483 = vmatprep.subr.bf16.mxu0 %v317
  %484 = vmatpush1.bf16.msra.mxu0 %v316
  %485 = vmatprep.subr.bf16.mxu0 %v321
  %486 = vmatpush1.bf16.msra.mxu0 %v320
  %487 = vmatprep.subr.bf16.mxu0 %v325
  %488 = vmatpush1.bf16.msra.mxu0 %v324
  %489 = vmatprep.subr.bf16.mxu0 %v329
  %490 = vmatpush1.bf16.msra.mxu0 %v328
  %491 = vmatprep.subr.bf16.mxu0 %v333
  %492 = vmatpush1.bf16.msra.mxu0 %v332
  %493 = vmatprep.subr.bf16.mxu0 %v337
  %494 = vmatpush1.bf16.msra.mxu0 %v336
  %495 = vmatprep.subr.bf16.mxu0 %v341
  %496 = vmatpush1.bf16.msra.mxu0 %v340
  %497 = vmatprep.subr.bf16.mxu0 %v345
  %498 = vmatpush1.bf16.msra.mxu0 %v344
  %499 = vmatprep.subr.bf16.mxu0 %v349
  %500 = vmatpush1.bf16.msra.mxu0 %v348
  %501 = vmatprep.subr.bf16.mxu0 %v353
  %502 = vmatpush1.bf16.msra.mxu0 %v352
  %503 = vmatprep.subr.bf16.mxu0 %v357
  %504 = vmatpush1.bf16.msra.mxu0 %v356
  %505 = vmatprep.subr.bf16.mxu0 %v361
  %506 = vmatpush1.bf16.msra.mxu0 %v360
  %507 = vmatprep.subr.bf16.mxu0 %v365
  %508 = vmatpush1.bf16.msra.mxu0 %v364
  %509 = vmatprep.subr.bf16.mxu0 %v369
  %510 = vmatpush1.bf16.msra.mxu0 %v368
  %511 = vmatprep.subr.bf16.mxu0 %v373
  %512 = vmatpush1.bf16.msra.mxu0 %v372
  %513 = vmatprep.mubr.bf16.mxu0 %v115
  %514 = vmatmul.mubr.bf16.gmra.mrb[0].mxu0 %v114
  %v515 = vpop.f32.mrb[0].mxu0
  %v516 = vadd.f32 %v101, %v515
  %v517 = vpop.f32.mrb[0].mxu0
  %v518 = vadd.f32 %v101, %v517
  %v519 = vpop.f32.mrb[0].mxu0
  %v520 = vadd.f32 %v106, %v519
  %v521 = vpop.f32.mrb[0].mxu0
  %v522 = vadd.f32 %v106, %v521
  %523 = vdwg.mxu0
  %vm524 = vcmp.gt.f32.partialorder %v473, 0.0
  %vm525 = vcmp.gt.f32.partialorder %v475, 0.0
  %vm526 = vcmp.gt.f32.partialorder %v516, 0.0
  %vm527 = vcmp.gt.f32.partialorder %v518, 0.0
  %vm528 = vcmp.gt.f32.partialorder %v477, 0.0
  %vm529 = vcmp.gt.f32.partialorder %v479, 0.0
  %vm530 = vcmp.gt.f32.partialorder %v520, 0.0
  %vm531 = vcmp.gt.f32.partialorder %v522, 0.0
  %v532 = vmin.f32 %v473, 0.0
  %v533 = vmin.f32 %v475, 0.0
  %v534 = vmin.f32 %v516, 0.0
  %v535 = vmin.f32 %v518, 0.0
  %v536 = vmin.f32 %v477, 0.0
  %v537 = vmin.f32 %v479, 0.0
  %v538 = vmin.f32 %v520, 0.0
  %v539 = vmin.f32 %v522, 0.0
  %v540 = vmul.f32 %v532, 1.442695
  %v541 = vpow.pop %v540
  %v542 = vmul.f32 %v533, 1.442695
  %v543 = vpow.pop %v542
  %v544 = vmul.f32 %v534, 1.442695
  %v545 = vpow.pop %v544
  %v546 = vmul.f32 %v535, 1.442695
  %v547 = vpow.pop %v546
  %v548 = vmul.f32 %v536, 1.442695
  %v549 = vpow.pop %v548
  %v550 = vmul.f32 %v537, 1.442695
  %v551 = vpow.pop %v550
  %v552 = vmul.f32 %v538, 1.442695
  %v553 = vpow.pop %v552
  %v554 = vmul.f32 %v539, 1.442695
  %v555 = vpow.pop %v554
  %v556 = vsub.f32 %v541, 1.0
  %v557 = vsub.f32 %v543, 1.0
  %v558 = vsub.f32 %v545, 1.0
  %v559 = vsub.f32 %v547, 1.0
  %v560 = vsub.f32 %v549, 1.0
  %v561 = vsub.f32 %v551, 1.0
  %v562 = vsub.f32 %v553, 1.0
  %v563 = vsub.f32 %v555, 1.0
  %v564 = vsel %vm524, %v473, %v556
  %v565 = vsel %vm525, %v475, %v557
  %v566 = vsel %vm526, %v516, %v558
  %v567 = vsel %vm527, %v518, %v559
  %v568 = vsel %vm528, %v477, %v560
  %v569 = vsel %vm529, %v479, %v561
  %v570 = vsel %vm530, %v520, %v562
  %v571 = vsel %vm531, %v522, %v563
  %v572 = vpack.c.bf16 %v568, %v564
  %v573 = vpack.c.bf16 %v569, %v565
  %v574 = vpack.c.bf16 %v570, %v566
  %v575 = vpack.c.bf16 %v571, %v567
  %v576 = vld [vmem:[%s2] sm:$0xf]
  %v577 = vld [vmem:[%s2 + $0x4] sm:$0xf]
  %v578 = vld [vmem:[%s2 + $0x8] sm:$0xf]
  %v579 = vld [vmem:[%s2 + $0xc] sm:$0xf]
  %v580 = vld [vmem:[%s2 + $0x10] sm:$0xf]
  %v581 = vld [vmem:[%s2 + $0x14] sm:$0xf]
  %v582 = vld [vmem:[%s2 + $0x18] sm:$0xf]
  %v583 = vld [vmem:[%s2 + $0x1c] sm:$0xf]
  %v584 = vld [vmem:[%s2 + $0x20] sm:$0xf]
  %v585 = vld [vmem:[%s2 + $0x24] sm:$0xf]
  %v586 = vld [vmem:[%s2 + $0x28] sm:$0xf]
  %v587 = vld [vmem:[%s2 + $0x2c] sm:$0xf]
  %v588 = vld [vmem:[%s2 + $0x30] sm:$0xf]
  %v589 = vld [vmem:[%s2 + $0x34] sm:$0xf]
  %v590 = vld [vmem:[%s2 + $0x38] sm:$0xf]
  %v591 = vld [vmem:[%s2 + $0x3c] sm:$0xf]
  %v592 = vld [vmem:[%s2 + $0x40] sm:$0xf]
  %v593 = vld [vmem:[%s2 + $0x44] sm:$0xf]
  %v594 = vld [vmem:[%s2 + $0x48] sm:$0xf]
  %v595 = vld [vmem:[%s2 + $0x4c] sm:$0xf]
  %v596 = vld [vmem:[%s2 + $0x50] sm:$0xf]
  %v597 = vld [vmem:[%s2 + $0x54] sm:$0xf]
  %v598 = vld [vmem:[%s2 + $0x58] sm:$0xf]
  %v599 = vld [vmem:[%s2 + $0x5c] sm:$0xf]
  %v600 = vld [vmem:[%s2 + $0x60] sm:$0xf]
  %v601 = vld [vmem:[%s2 + $0x64] sm:$0xf]
  %v602 = vld [vmem:[%s2 + $0x68] sm:$0xf]
  %v603 = vld [vmem:[%s2 + $0x6c] sm:$0xf]
  %v604 = vld [vmem:[%s2 + $0x70] sm:$0xf]
  %v605 = vld [vmem:[%s2 + $0x74] sm:$0xf]
  %v606 = vld [vmem:[%s2 + $0x78] sm:$0xf]
  %v607 = vld [vmem:[%s2 + $0x7c] sm:$0xf]
  %v608 = vld [vmem:[%s2 + $0x80] sm:$0xf]
  %v609 = vld [vmem:[%s2 + $0x84] sm:$0xf]
  %v610 = vld [vmem:[%s2 + $0x88] sm:$0xf]
  %v611 = vld [vmem:[%s2 + $0x8c] sm:$0xf]
  %v612 = vld [vmem:[%s2 + $0x90] sm:$0xf]
  %v613 = vld [vmem:[%s2 + $0x94] sm:$0xf]
  %v614 = vld [vmem:[%s2 + $0x98] sm:$0xf]
  %v615 = vld [vmem:[%s2 + $0x9c] sm:$0xf]
  %v616 = vld [vmem:[%s2 + $0xa0] sm:$0xf]
  %v617 = vld [vmem:[%s2 + $0xa4] sm:$0xf]
  %v618 = vld [vmem:[%s2 + $0xa8] sm:$0xf]
  %v619 = vld [vmem:[%s2 + $0xac] sm:$0xf]
  %v620 = vld [vmem:[%s2 + $0xb0] sm:$0xf]
  %v621 = vld [vmem:[%s2 + $0xb4] sm:$0xf]
  %v622 = vld [vmem:[%s2 + $0xb8] sm:$0xf]
  %v623 = vld [vmem:[%s2 + $0xbc] sm:$0xf]
  %v624 = vld [vmem:[%s2 + $0xc0] sm:$0xf]
  %v625 = vld [vmem:[%s2 + $0xc4] sm:$0xf]
  %v626 = vld [vmem:[%s2 + $0xc8] sm:$0xf]
  %v627 = vld [vmem:[%s2 + $0xcc] sm:$0xf]
  %v628 = vld [vmem:[%s2 + $0xd0] sm:$0xf]
  %v629 = vld [vmem:[%s2 + $0xd4] sm:$0xf]
  %v630 = vld [vmem:[%s2 + $0xd8] sm:$0xf]
  %v631 = vld [vmem:[%s2 + $0xdc] sm:$0xf]
  %v632 = vld [vmem:[%s2 + $0xe0] sm:$0xf]
  %v633 = vld [vmem:[%s2 + $0xe4] sm:$0xf]
  %v634 = vld [vmem:[%s2 + $0xe8] sm:$0xf]
  %v635 = vld [vmem:[%s2 + $0xec] sm:$0xf]
  %v636 = vld [vmem:[%s2 + $0xf0] sm:$0xf]
  %v637 = vld [vmem:[%s2 + $0xf4] sm:$0xf]
  %v638 = vld [vmem:[%s2 + $0xf8] sm:$0xf]
  %v639 = vld [vmem:[%s2 + $0xfc] sm:$0xf]
  %v704 = vunpack.c.l.b16 %v576
  %v705 = vunpack.c.l.b16 %v577
  %v706 = vunpack.c.l.b16 %v578
  %v707 = vunpack.c.l.b16 %v579
  %v708 = vunpack.c.l.b16 %v580
  %v709 = vunpack.c.l.b16 %v581
  %v710 = vunpack.c.l.b16 %v582
  %v711 = vunpack.c.l.b16 %v583
  %v712 = vunpack.c.l.b16 %v584
  %v713 = vunpack.c.l.b16 %v585
  %v714 = vunpack.c.l.b16 %v586
  %v715 = vunpack.c.l.b16 %v587
  %v716 = vunpack.c.l.b16 %v588
  %v717 = vunpack.c.l.b16 %v589
  %v718 = vunpack.c.l.b16 %v590
  %v719 = vunpack.c.l.b16 %v591
  %v720 = vunpack.c.l.b16 %v592
  %v721 = vunpack.c.l.b16 %v593
  %v722 = vunpack.c.l.b16 %v594
  %v723 = vunpack.c.l.b16 %v595
  %v724 = vunpack.c.l.b16 %v596
  %v725 = vunpack.c.l.b16 %v597
  %v726 = vunpack.c.l.b16 %v598
  %v727 = vunpack.c.l.b16 %v599
  %v728 = vunpack.c.l.b16 %v600
  %v729 = vunpack.c.l.b16 %v601
  %v730 = vunpack.c.l.b16 %v602
  %v731 = vunpack.c.l.b16 %v603
  %v732 = vunpack.c.l.b16 %v604
  %v733 = vunpack.c.l.b16 %v605
  %v734 = vunpack.c.l.b16 %v606
  %v735 = vunpack.c.l.b16 %v607
  %v736 = vunpack.c.l.b16 %v608
  %v737 = vunpack.c.l.b16 %v609
  %v738 = vunpack.c.l.b16 %v610
  %v739 = vunpack.c.l.b16 %v611
  %v740 = vunpack.c.l.b16 %v612
  %v741 = vunpack.c.l.b16 %v613
  %v742 = vunpack.c.l.b16 %v614
  %v743 = vunpack.c.l.b16 %v615
  %v744 = vunpack.c.l.b16 %v616
  %v745 = vunpack.c.l.b16 %v617
  %v746 = vunpack.c.l.b16 %v618
  %v747 = vunpack.c.l.b16 %v619
  %v748 = vunpack.c.l.b16 %v620
  %v749 = vunpack.c.l.b16 %v621
  %v750 = vunpack.c.l.b16 %v622
  %v751 = vunpack.c.l.b16 %v623
  %v752 = vunpack.c.l.b16 %v624
  %v753 = vunpack.c.l.b16 %v625
  %v754 = vunpack.c.l.b16 %v626
  %v755 = vunpack.c.l.b16 %v627
  %v756 = vunpack.c.l.b16 %v628
  %v757 = vunpack.c.l.b16 %v629
  %v758 = vunpack.c.l.b16 %v630
  %v759 = vunpack.c.l.b16 %v631
  %v760 = vunpack.c.l.b16 %v632
  %v761 = vunpack.c.l.b16 %v633
  %v762 = vunpack.c.l.b16 %v634
  %v763 = vunpack.c.l.b16 %v635
  %v764 = vunpack.c.l.b16 %v636
  %v765 = vunpack.c.l.b16 %v637
  %v766 = vunpack.c.l.b16 %v638
  %v767 = vunpack.c.l.b16 %v639
  %v768 = vpack.c.b16 %v705, %v704
  %v769 = vpack.c.b16 %v707, %v706
  %v770 = vpack.c.b16 %v709, %v708
  %v771 = vpack.c.b16 %v711, %v710
  %v772 = vpack.c.b16 %v713, %v712
  %v773 = vpack.c.b16 %v715, %v714
  %v774 = vpack.c.b16 %v717, %v716
  %v775 = vpack.c.b16 %v719, %v718
  %v776 = vpack.c.b16 %v721, %v720
  %v777 = vpack.c.b16 %v723, %v722
  %v778 = vpack.c.b16 %v725, %v724
  %v779 = vpack.c.b16 %v727, %v726
  %v780 = vpack.c.b16 %v729, %v728
  %v781 = vpack.c.b16 %v731, %v730
  %v782 = vpack.c.b16 %v733, %v732
  %v783 = vpack.c.b16 %v735, %v734
  %v784 = vpack.c.b16 %v737, %v736
  %v785 = vpack.c.b16 %v739, %v738
  %v786 = vpack.c.b16 %v741, %v740
  %v787 = vpack.c.b16 %v743, %v742
  %v788 = vpack.c.b16 %v745, %v744
  %v789 = vpack.c.b16 %v747, %v746
  %v790 = vpack.c.b16 %v749, %v748
  %v791 = vpack.c.b16 %v751, %v750
  %v792 = vpack.c.b16 %v753, %v752
  %v793 = vpack.c.b16 %v755, %v754
  %v794 = vpack.c.b16 %v757, %v756
  %v795 = vpack.c.b16 %v759, %v758
  %v796 = vpack.c.b16 %v761, %v760
  %v797 = vpack.c.b16 %v763, %v762
  %v798 = vpack.c.b16 %v765, %v764
  %v799 = vpack.c.b16 %v767, %v766
  %832 = vmatprep.subr.bf16.mxu0 0
  %833 = vmatpush1.bf16.msra.mxu0 %v768
  %834 = vmatprep.subr.bf16.mxu0 0
  %835 = vmatpush1.bf16.msra.mxu0 %v769
  %836 = vmatprep.subr.bf16.mxu0 0
  %837 = vmatpush1.bf16.msra.mxu0 %v770
  %838 = vmatprep.subr.bf16.mxu0 0
  %839 = vmatpush1.bf16.msra.mxu0 %v771
  %840 = vmatprep.subr.bf16.mxu0 0
  %841 = vmatpush1.bf16.msra.mxu0 %v772
  %842 = vmatprep.subr.bf16.mxu0 0
  %843 = vmatpush1.bf16.msra.mxu0 %v773
  %844 = vmatprep.subr.bf16.mxu0 0
  %845 = vmatpush1.bf16.msra.mxu0 %v774
  %846 = vmatprep.subr.bf16.mxu0 0
  %847 = vmatpush1.bf16.msra.mxu0 %v775
  %848 = vmatprep.subr.bf16.mxu0 0
  %849 = vmatpush1.bf16.msra.mxu0 %v776
  %850 = vmatprep.subr.bf16.mxu0 0
  %851 = vmatpush1.bf16.msra.mxu0 %v777
  %852 = vmatprep.subr.bf16.mxu0 0
  %853 = vmatpush1.bf16.msra.mxu0 %v778
  %854 = vmatprep.subr.bf16.mxu0 0
  %855 = vmatpush1.bf16.msra.mxu0 %v779
  %856 = vmatprep.subr.bf16.mxu0 0
  %857 = vmatpush1.bf16.msra.mxu0 %v780
  %858 = vmatprep.subr.bf16.mxu0 0
  %859 = vmatpush1.bf16.msra.mxu0 %v781
  %860 = vmatprep.subr.bf16.mxu0 0
  %861 = vmatpush1.bf16.msra.mxu0 %v782
  %862 = vmatprep.subr.bf16.mxu0 0
  %863 = vmatpush1.bf16.msra.mxu0 %v783
  %864 = vmatprep.mubr.bf16.mxu0 %v573
  %865 = vmatmul.mubr.bf16.gmra.mrb[0].mxu0 %v572
  %v866 = vpop.f32.mrb[0].mxu0
  %v867 = vadd.f32 0.0, %v866
  %v868 = vpop.f32.mrb[0].mxu0
  %v869 = vpop.f32.mrb[0].mxu0
  %v870 = vadd.f32 0.0, %v869
  %v871 = vpop.f32.mrb[0].mxu0
  %872 = vdwg.mxu0
  %873 = vmatprep.subr.bf16.mxu0 0
  %874 = vmatpush1.bf16.msra.mxu0 %v784
  %875 = vmatprep.subr.bf16.mxu0 0
  %876 = vmatpush1.bf16.msra.mxu0 %v785
  %877 = vmatprep.subr.bf16.mxu0 0
  %878 = vmatpush1.bf16.msra.mxu0 %v786
  %879 = vmatprep.subr.bf16.mxu0 0
  %880 = vmatpush1.bf16.msra.mxu0 %v787
  %881 = vmatprep.subr.bf16.mxu0 0
  %882 = vmatpush1.bf16.msra.mxu0 %v788
  %883 = vmatprep.subr.bf16.mxu0 0
  %884 = vmatpush1.bf16.msra.mxu0 %v789
  %885 = vmatprep.subr.bf16.mxu0 0
  %886 = vmatpush1.bf16.msra.mxu0 %v790
  %887 = vmatprep.subr.bf16.mxu0 0
  %888 = vmatpush1.bf16.msra.mxu0 %v791
  %889 = vmatprep.subr.bf16.mxu0 0
  %890 = vmatpush1.bf16.msra.mxu0 %v792
  %891 = vmatprep.subr.bf16.mxu0 0
  %892 = vmatpush1.bf16.msra.mxu0 %v793
  %893 = vmatprep.subr.bf16.mxu0 0
  %894 = vmatpush1.bf16.msra.mxu0 %v794
  %895 = vmatprep.subr.bf16.mxu0 0
  %896 = vmatpush1.bf16.msra.mxu0 %v795
  %897 = vmatprep.subr.bf16.mxu0 0
  %898 = vmatpush1.bf16.msra.mxu0 %v796
  %899 = vmatprep.subr.bf16.mxu0 0
  %900 = vmatpush1.bf16.msra.mxu0 %v797
  %901 = vmatprep.subr.bf16.mxu0 0
  %902 = vmatpush1.bf16.msra.mxu0 %v798
  %903 = vmatprep.subr.bf16.mxu0 0
  %904 = vmatpush1.bf16.msra.mxu0 %v799
  %905 = vmatprep.mubr.bf16.mxu0 %v575
  %906 = vmatmul.mubr.bf16.gmra.mrb[0].mxu0 %v574
  %v907 = vpop.f32.mrb[0].mxu0
  %v908 = vadd.f32 %v867, %v907
  %v909 = vpop.f32.mrb[0].mxu0
  %v910 = vpop.f32.mrb[0].mxu0
  %v911 = vadd.f32 %v870, %v910
  %v912 = vpop.f32.mrb[0].mxu0
  %913 = vdwg.mxu0
  %914 = vrot.lane.b32.xlu0 %v908, 7
  %v915 = vpop.permute.xlu0 %914
  %916 = vrot.lane.b32.xlu0 %v911, 7
  %v917 = vpop.permute.xlu0 %916
  %v918 = vld [vmem:[%s3] sm:$0xff]
  %v919 = vld [vmem:[%s3 + $0x8] sm:$0xff]
  %v920 = vmul.f32 %v918, %v915
  %v921 = vmul.f32 %v919, %v917
  %922 = vrot.lane.b32.xlu0 %v908, 6
  %v923 = vpop.permute.xlu0 %922
  %924 = vrot.lane.b32.xlu0 %v911, 6
  %v925 = vpop.permute.xlu0 %924
  %s926 = scalar_lea.vmem %s3, 16
  %v927 = vld [vmem:[%s926] sm:$0xff]
  %v928 = vld [vmem:[%s926 + $0x8] sm:$0xff]
  %v929 = vmul.f32 %v927, %v923
  %v930 = vmul.f32 %v928, %v925
  %v931 = vadd.f32 %v920, %v929
  %v932 = vadd.f32 %v921, %v930
  %933 = vrot.lane.b32.xlu0 %v908, 5
  %v934 = vpop.permute.xlu0 %933
  %935 = vrot.lane.b32.xlu0 %v911, 5
  %v936 = vpop.permute.xlu0 %935
  %s937 = scalar_lea.vmem %s3, 32
  %v938 = vld [vmem:[%s937] sm:$0xff]
  %v939 = vld [vmem:[%s937 + $0x8] sm:$0xff]
  %v940 = vmul.f32 %v938, %v934
  %v941 = vmul.f32 %v939, %v936
  %v942 = vadd.f32 %v931, %v940
  %v943 = vadd.f32 %v932, %v941
  %944 = vrot.lane.b32.xlu0 %v908, 4
  %v945 = vpop.permute.xlu0 %944
  %946 = vrot.lane.b32.xlu0 %v911, 4
  %v947 = vpop.permute.xlu0 %946
  %s948 = scalar_lea.vmem %s3, 48
  %v949 = vld [vmem:[%s948] sm:$0xff]
  %v950 = vld [vmem:[%s948 + $0x8] sm:$0xff]
  %v951 = vmul.f32 %v949, %v945
  %v952 = vmul.f32 %v950, %v947
  %v953 = vadd.f32 %v942, %v951
  %v954 = vadd.f32 %v943, %v952
  %955 = vrot.lane.b32.xlu0 %v908, 3
  %v956 = vpop.permute.xlu0 %955
  %957 = vrot.lane.b32.xlu0 %v911, 3
  %v958 = vpop.permute.xlu0 %957
  %s959 = scalar_lea.vmem %s3, 64
  %v960 = vld [vmem:[%s959] sm:$0xff]
  %v961 = vld [vmem:[%s959 + $0x8] sm:$0xff]
  %v962 = vmul.f32 %v960, %v956
  %v963 = vmul.f32 %v961, %v958
  %964 = vrot.lane.b32.xlu0 %v908, 2
  %v965 = vpop.permute.xlu0 %964
  %966 = vrot.lane.b32.xlu0 %v911, 2
  %v967 = vpop.permute.xlu0 %966
  %s968 = scalar_lea.vmem %s3, 80
  %v969 = vld [vmem:[%s968] sm:$0xff]
  %v970 = vld [vmem:[%s968 + $0x8] sm:$0xff]
  %v971 = vmul.f32 %v969, %v965
  %v972 = vmul.f32 %v970, %v967
  %v973 = vadd.f32 %v962, %v971
  %v974 = vadd.f32 %v963, %v972
  %975 = vrot.lane.b32.xlu0 %v908, 1
  %v976 = vpop.permute.xlu0 %975
  %977 = vrot.lane.b32.xlu0 %v911, 1
  %v978 = vpop.permute.xlu0 %977
  %s979 = scalar_lea.vmem %s3, 96
  %v980 = vld [vmem:[%s979] sm:$0xff]
  %v981 = vld [vmem:[%s979 + $0x8] sm:$0xff]
  %v982 = vmul.f32 %v980, %v976
  %v983 = vmul.f32 %v981, %v978
  %v984 = vadd.f32 %v973, %v982
  %v985 = vadd.f32 %v974, %v983
  %s986 = scalar_lea.vmem %s3, 112
  %v987 = vld [vmem:[%s986] sm:$0xff]
  %v988 = vld [vmem:[%s986 + $0x8] sm:$0xff]
  %v989 = vmul.f32 %v987, %v908
  %v990 = vmul.f32 %v988, %v911
  %v991 = vadd.f32 %v984, %v989
  %v992 = vadd.f32 %v985, %v990
  %993 = vrot.lane.b32.xlu0 %v908, 127
  %v994 = vpop.permute.xlu0 %993
  %995 = vrot.lane.b32.xlu0 %v911, 127
  %v996 = vpop.permute.xlu0 %995
  %s997 = scalar_lea.vmem %s3, 128
  %v998 = vld [vmem:[%s997] sm:$0xff]
  %v999 = vld [vmem:[%s997 + $0x8] sm:$0xff]
  %v1000 = vmul.f32 %v998, %v994
  %v1001 = vmul.f32 %v999, %v996
  %1002 = vrot.lane.b32.xlu0 %v908, 126
  %v1003 = vpop.permute.xlu0 %1002
  %1004 = vrot.lane.b32.xlu0 %v911, 126
  %v1005 = vpop.permute.xlu0 %1004
  %s1006 = scalar_lea.vmem %s3, 144
  %v1007 = vld [vmem:[%s1006] sm:$0xff]
  %v1008 = vld [vmem:[%s1006 + $0x8] sm:$0xff]
  %v1009 = vmul.f32 %v1007, %v1003
  %v1010 = vmul.f32 %v1008, %v1005
  %v1011 = vadd.f32 %v1000, %v1009
  %v1012 = vadd.f32 %v1001, %v1010
  %1013 = vrot.lane.b32.xlu0 %v908, 125
  %v1014 = vpop.permute.xlu0 %1013
  %1015 = vrot.lane.b32.xlu0 %v911, 125
  %v1016 = vpop.permute.xlu0 %1015
  %s1017 = scalar_lea.vmem %s3, 160
  %v1018 = vld [vmem:[%s1017] sm:$0xff]
  %v1019 = vld [vmem:[%s1017 + $0x8] sm:$0xff]
  %v1020 = vmul.f32 %v1018, %v1014
  %v1021 = vmul.f32 %v1019, %v1016
  %v1022 = vadd.f32 %v1011, %v1020
  %v1023 = vadd.f32 %v1012, %v1021
  %1024 = vrot.lane.b32.xlu0 %v908, 124
  %v1025 = vpop.permute.xlu0 %1024
  %1026 = vrot.lane.b32.xlu0 %v911, 124
  %v1027 = vpop.permute.xlu0 %1026
  %s1028 = scalar_lea.vmem %s3, 176
  %v1029 = vld [vmem:[%s1028] sm:$0xff]
  %v1030 = vld [vmem:[%s1028 + $0x8] sm:$0xff]
  %v1031 = vmul.f32 %v1029, %v1025
  %v1032 = vmul.f32 %v1030, %v1027
  %v1033 = vadd.f32 %v1022, %v1031
  %v1034 = vadd.f32 %v1023, %v1032
  %1035 = vrot.lane.b32.xlu0 %v908, 123
  %v1036 = vpop.permute.xlu0 %1035
  %1037 = vrot.lane.b32.xlu0 %v911, 123
  %v1038 = vpop.permute.xlu0 %1037
  %s1039 = scalar_lea.vmem %s3, 192
  %v1040 = vld [vmem:[%s1039] sm:$0xff]
  %v1041 = vld [vmem:[%s1039 + $0x8] sm:$0xff]
  %v1042 = vmul.f32 %v1040, %v1036
  %v1043 = vmul.f32 %v1041, %v1038
  %1044 = vrot.lane.b32.xlu0 %v908, 122
  %v1045 = vpop.permute.xlu0 %1044
  %1046 = vrot.lane.b32.xlu0 %v911, 122
  %v1047 = vpop.permute.xlu0 %1046
  %s1048 = scalar_lea.vmem %s3, 208
  %v1049 = vld [vmem:[%s1048] sm:$0xff]
  %v1050 = vld [vmem:[%s1048 + $0x8] sm:$0xff]
  %v1051 = vmul.f32 %v1049, %v1045
  %v1052 = vmul.f32 %v1050, %v1047
  %v1053 = vadd.f32 %v1042, %v1051
  %v1054 = vadd.f32 %v1043, %v1052
  %1055 = vrot.lane.b32.xlu0 %v908, 121
  %v1056 = vpop.permute.xlu0 %1055
  %1057 = vrot.lane.b32.xlu0 %v911, 121
  %v1058 = vpop.permute.xlu0 %1057
  %s1059 = scalar_lea.vmem %s3, 224
  %v1060 = vld [vmem:[%s1059] sm:$0xff]
  %v1061 = vld [vmem:[%s1059 + $0x8] sm:$0xff]
  %v1062 = vmul.f32 %v1060, %v1056
  %v1063 = vmul.f32 %v1061, %v1058
  %v1064 = vadd.f32 %v1053, %v1062
  %v1065 = vadd.f32 %v1054, %v1063
  %1066 = vrot.lane.b32.xlu0 %v908, 120
  %v1067 = vpop.permute.xlu0 %1066
  %1068 = vrot.lane.b32.xlu0 %v911, 120
  %v1069 = vpop.permute.xlu0 %1068
  %s1070 = scalar_lea.vmem %s3, 240
  %v1071 = vld [vmem:[%s1070] sm:$0xff]
  %v1072 = vld [vmem:[%s1070 + $0x8] sm:$0xff]
  %v1073 = vmul.f32 %v1071, %v1067
  %v1074 = vmul.f32 %v1072, %v1069
  %v1075 = vadd.f32 %v1064, %v1073
  %v1076 = vadd.f32 %v1065, %v1074
  %v1077 = vadd.f32 %v953, %v991
  %v1078 = vadd.f32 %v954, %v992
  %v1079 = vadd.f32 %v1033, %v1075
  %v1080 = vadd.f32 %v1034, %v1076
  %v1081 = vadd.f32 %v1077, %v1079
  %v1082 = vadd.f32 %v1078, %v1080
  %v1083 = vld [vmem:[%s4] sm:$0xf]
  %v1084 = vld [vmem:[%s4 + $0x4] sm:$0xf]
  %v1085 = vpack.c.bf16 %v1082, %v1081
  %1086 = vset.pattern.permute.xlu0 1
  %1087 = vperm.xlu0 %1086, %v30
  %v1088 = vpop.permute.xlu0 %1087
  %1090 = vset.pattern.permute.xlu0 1
  %1091 = vperm.xlu0 %1090, %v31
  %v1092 = vpop.permute.xlu0 %1091
  %v1096 = vunpack.c.l.b16 %v1083
  %v1097 = vunpack.c.l.b16 %v1084
  %v1098 = vpack.c.b16 %v1097, %v1096
  %vm1099 = vcmask 130048
  %v1101 = vsel %vm1099, %v1098, 0
  %1103 = vmatprep.subr.bf16.mxu0 0
  %1104 = vmatpush1.bf16.msra.mxu0 %v1085
  %1105 = vmatprep.subr.bf16.mxu0 0
  %1106 = vmatpush1.bf16.msra.mxu0 0
  %1107 = vmatprep.subr.bf16.mxu0 0
  %1108 = vmatpush1.bf16.msra.mxu0 0
  %1109 = vmatprep.subr.bf16.mxu0 0
  %1110 = vmatpush1.bf16.msra.mxu0 0
  %1111 = vmatprep.subr.bf16.mxu0 0
  %1112 = vmatpush1.bf16.msra.mxu0 0
  %1113 = vmatprep.subr.bf16.mxu0 0
  %1114 = vmatpush1.bf16.msra.mxu0 0
  %1115 = vmatprep.subr.bf16.mxu0 0
  %1116 = vmatpush1.bf16.msra.mxu0 0
  %1117 = vmatprep.subr.bf16.mxu0 0
  %1118 = vmatpush1.bf16.msra.mxu0 0
  %1119 = vmatprep.subr.bf16.mxu0 0
  %1120 = vmatpush1.bf16.msra.mxu0 0
  %1121 = vmatprep.subr.bf16.mxu0 0
  %1122 = vmatpush1.bf16.msra.mxu0 0
  %1123 = vmatprep.subr.bf16.mxu0 0
  %1124 = vmatpush1.bf16.msra.mxu0 0
  %1125 = vmatprep.subr.bf16.mxu0 0
  %1126 = vmatpush1.bf16.msra.mxu0 0
  %1127 = vmatprep.subr.bf16.mxu0 0
  %1128 = vmatpush1.bf16.msra.mxu0 0
  %1129 = vmatprep.subr.bf16.mxu0 0
  %1130 = vmatpush1.bf16.msra.mxu0 0
  %1131 = vmatprep.subr.bf16.mxu0 0
  %1132 = vmatpush1.bf16.msra.mxu0 0
  %1133 = vmatprep.subr.bf16.mxu0 0
  %1134 = vmatpush1.bf16.msra.mxu0 0
  %1135 = vmatprep.mubr.bf16.mxu0 0
  %1136 = vmatmul.mubr.bf16.gmra.mrb[0].mxu0 %v1101
  %v1137 = vpop.f32.mrb[0].mxu0
  %v1138 = vadd.f32 %v1088, %v1137
  %v1139 = vpop.f32.mrb[0].mxu0
  %v1140 = vpop.f32.mrb[0].mxu0
  %v1141 = vadd.f32 %v1092, %v1140
  %v1142 = vpop.f32.mrb[0].mxu0
  %1143 = vdwg.mxu0
  %vm1144 = vcmp.gt.f32.partialorder %v1138, 0.0
  %vm1145 = vcmp.gt.f32.partialorder %v1141, 0.0
  %v1146 = vmin.f32 %v1138, 0.0
  %v1147 = vmin.f32 %v1141, 0.0
  %v1148 = vmul.f32 %v1146, 1.442695
  %v1149 = vpow.pop %v1148
  %v1150 = vmul.f32 %v1147, 1.442695
  %v1151 = vpow.pop %v1150
  %v1152 = vsub.f32 %v1149, 1.0
  %v1153 = vsub.f32 %v1151, 1.0
  %v1154 = vsel %vm1144, %v1138, %v1152
  %v1155 = vsel %vm1145, %v1141, %v1153
  %v1156 = vld [vmem:[%s5] sm:$0xff]
  %v1157 = vld [vmem:[%s5 + $0x8] sm:$0xff]
  %v1158 = vld [vmem:[%s5 + $0x10] sm:$0xff]
  %v1159 = vld [vmem:[%s5 + $0x18] sm:$0xff]
  %v1160 = vld [vmem:[%s5 + $0x20] sm:$0xff]
  %v1161 = vld [vmem:[%s5 + $0x28] sm:$0xff]
  %v1162 = vld [vmem:[%s5 + $0x30] sm:$0xff]
  %v1163 = vld [vmem:[%s5 + $0x38] sm:$0xff]
  %v1164 = vld [vmem:[%s5 + $0x40] sm:$0xff]
  %v1165 = vld [vmem:[%s5 + $0x48] sm:$0xff]
  %v1166 = vld [vmem:[%s5 + $0x50] sm:$0xff]
  %v1167 = vld [vmem:[%s5 + $0x58] sm:$0xff]
  %v1168 = vld [vmem:[%s5 + $0x60] sm:$0xff]
  %v1169 = vld [vmem:[%s5 + $0x68] sm:$0xff]
  %v1170 = vld [vmem:[%s5 + $0x70] sm:$0xff]
  %v1171 = vld [vmem:[%s5 + $0x78] sm:$0xff]
  %1172 = vmatprep.subr.mxu0 0.0
  %1173 = vmatpush1.msra.mxu0 %v1156
  %1174 = vmatprep.subr.mxu0 0.0
  %1175 = vmatpush1.msra.mxu0 %v1157
  %1176 = vmatprep.subr.mxu0 0.0
  %1177 = vmatpush1.msra.mxu0 %v1158
  %1178 = vmatprep.subr.mxu0 0.0
  %1179 = vmatpush1.msra.mxu0 %v1159
  %1180 = vmatprep.subr.mxu0 0.0
  %1181 = vmatpush1.msra.mxu0 %v1160
  %1182 = vmatprep.subr.mxu0 0.0
  %1183 = vmatpush1.msra.mxu0 %v1161
  %1184 = vmatprep.subr.mxu0 0.0
  %1185 = vmatpush1.msra.mxu0 %v1162
  %1186 = vmatprep.subr.mxu0 0.0
  %1187 = vmatpush1.msra.mxu0 %v1163
  %1188 = vmatprep.subr.mxu0 0.0
  %1189 = vmatpush1.msra.mxu0 %v1164
  %1190 = vmatprep.subr.mxu0 0.0
  %1191 = vmatpush1.msra.mxu0 %v1165
  %1192 = vmatprep.subr.mxu0 0.0
  %1193 = vmatpush1.msra.mxu0 %v1166
  %1194 = vmatprep.subr.mxu0 0.0
  %1195 = vmatpush1.msra.mxu0 %v1167
  %1196 = vmatprep.subr.mxu0 0.0
  %1197 = vmatpush1.msra.mxu0 %v1168
  %1198 = vmatprep.subr.mxu0 0.0
  %1199 = vmatpush1.msra.mxu0 %v1169
  %1200 = vmatprep.subr.mxu0 0.0
  %1201 = vmatpush1.msra.mxu0 %v1170
  %1202 = vmatprep.subr.mxu0 0.0
  %1203 = vmatpush1.msra.mxu0 %v1171
  %1204 = vmatprep.subr.mxu0 0.0
  %1205 = vmatpush1.msra.mxu0 0.0
  %1206 = vmatprep.subr.mxu0 0.0
  %1207 = vmatpush1.msra.mxu0 0.0
  %1208 = vmatprep.subr.mxu0 0.0
  %1209 = vmatpush1.msra.mxu0 0.0
  %1210 = vmatprep.subr.mxu0 0.0
  %1211 = vmatpush1.msra.mxu0 0.0
  %1212 = vmatprep.subr.mxu0 0.0
  %1213 = vmatpush1.msra.mxu0 0.0
  %1214 = vmatprep.subr.mxu0 0.0
  %1215 = vmatpush1.msra.mxu0 0.0
  %1216 = vmatprep.subr.mxu0 0.0
  %1217 = vmatpush1.msra.mxu0 0.0
  %1218 = vmatprep.subr.mxu0 0.0
  %1219 = vmatpush1.msra.mxu0 0.0
  %1220 = vmatprep.subr.mxu0 0.0
  %1221 = vmatpush1.msra.mxu0 0.0
  %1222 = vmatprep.subr.mxu0 0.0
  %1223 = vmatpush1.msra.mxu0 0.0
  %1224 = vmatprep.subr.mxu0 0.0
  %1225 = vmatpush1.msra.mxu0 0.0
  %1226 = vmatprep.subr.mxu0 0.0
  %1227 = vmatpush1.msra.mxu0 0.0
  %1228 = vmatprep.subr.mxu0 0.0
  %1229 = vmatpush1.msra.mxu0 0.0
  %1230 = vmatprep.subr.mxu0 0.0
  %1231 = vmatpush1.msra.mxu0 0.0
  %1232 = vmatprep.subr.mxu0 0.0
  %1233 = vmatpush1.msra.mxu0 0.0
  %1234 = vmatprep.subr.mxu0 0.0
  %1235 = vmatpush1.msra.mxu0 0.0
  %1236 = vmatprep.mubr.f32.mxu0 0.0
  %1237 = vmatmul.mubr.f32.gmra.mrb[0].mxu0 %v1154
  %v1238 = vpop.f32.mrb[0].mxu0
  %v1239 = vadd.f32 0.0, %v1238
  %v1240 = vpop.f32.mrb[0].mxu0
  %1241 = vmatprep.mubr.f32.mxu0 0.0
  %1242 = vmatmul.mubr.f32.gmra.mrb[0].mxu0 %v1155
  %v1243 = vpop.f32.mrb[0].mxu0
  %v1244 = vadd.f32 0.0, %v1243
  %v1245 = vpop.f32.mrb[0].mxu0
  %1246 = vdwg.mxu0
  %v1247 = vld [vmem:[%s6] sm:$0xf]
  %v1249 = vsel %vm1099, %v1247, 0
  %1251 = vmatprep.subr.mxu0 0.0
  %1252 = vmatpush1.msra.mxu0 %v1239
  %1253 = vmatprep.subr.mxu0 0.0
  %1254 = vmatpush1.msra.mxu0 %v1244
  %1255 = vmatprep.subr.mxu0 0.0
  %1256 = vmatpush1.msra.mxu0 0.0
  %1257 = vmatprep.subr.mxu0 0.0
  %1258 = vmatpush1.msra.mxu0 0.0
  %1259 = vmatprep.subr.mxu0 0.0
  %1260 = vmatpush1.msra.mxu0 0.0
  %1261 = vmatprep.subr.mxu0 0.0
  %1262 = vmatpush1.msra.mxu0 0.0
  %1263 = vmatprep.subr.mxu0 0.0
  %1264 = vmatpush1.msra.mxu0 0.0
  %1265 = vmatprep.subr.mxu0 0.0
  %1266 = vmatpush1.msra.mxu0 0.0
  %1267 = vmatprep.subr.mxu0 0.0
  %1268 = vmatpush1.msra.mxu0 0.0
  %1269 = vmatprep.subr.mxu0 0.0
  %1270 = vmatpush1.msra.mxu0 0.0
  %1271 = vmatprep.subr.mxu0 0.0
  %1272 = vmatpush1.msra.mxu0 0.0
  %1273 = vmatprep.subr.mxu0 0.0
  %1274 = vmatpush1.msra.mxu0 0.0
  %1275 = vmatprep.subr.mxu0 0.0
  %1276 = vmatpush1.msra.mxu0 0.0
  %1277 = vmatprep.subr.mxu0 0.0
  %1278 = vmatpush1.msra.mxu0 0.0
  %1279 = vmatprep.subr.mxu0 0.0
  %1280 = vmatpush1.msra.mxu0 0.0
  %1281 = vmatprep.subr.mxu0 0.0
  %1282 = vmatpush1.msra.mxu0 0.0
  %1283 = vmatprep.subr.mxu0 0.0
  %1284 = vmatpush1.msra.mxu0 0.0
  %1285 = vmatprep.subr.mxu0 0.0
  %1286 = vmatpush1.msra.mxu0 0.0
  %1287 = vmatprep.subr.mxu0 0.0
  %1288 = vmatpush1.msra.mxu0 0.0
  %1289 = vmatprep.subr.mxu0 0.0
  %1290 = vmatpush1.msra.mxu0 0.0
  %1291 = vmatprep.subr.mxu0 0.0
  %1292 = vmatpush1.msra.mxu0 0.0
  %1293 = vmatprep.subr.mxu0 0.0
  %1294 = vmatpush1.msra.mxu0 0.0
  %1295 = vmatprep.subr.mxu0 0.0
  %1296 = vmatpush1.msra.mxu0 0.0
  %1297 = vmatprep.subr.mxu0 0.0
  %1298 = vmatpush1.msra.mxu0 0.0
  %1299 = vmatprep.subr.mxu0 0.0
  %1300 = vmatpush1.msra.mxu0 0.0
  %1301 = vmatprep.subr.mxu0 0.0
  %1302 = vmatpush1.msra.mxu0 0.0
  %1303 = vmatprep.subr.mxu0 0.0
  %1304 = vmatpush1.msra.mxu0 0.0
  %1305 = vmatprep.subr.mxu0 0.0
  %1306 = vmatpush1.msra.mxu0 0.0
  %1307 = vmatprep.subr.mxu0 0.0
  %1308 = vmatpush1.msra.mxu0 0.0
  %1309 = vmatprep.subr.mxu0 0.0
  %1310 = vmatpush1.msra.mxu0 0.0
  %1311 = vmatprep.subr.mxu0 0.0
  %1312 = vmatpush1.msra.mxu0 0.0
  %1313 = vmatprep.subr.mxu0 0.0
  %1314 = vmatpush1.msra.mxu0 0.0
  %1315 = vmatprep.mubr.f32.mxu0 0.0
  %1316 = vmatmul.mubr.f32.gmra.mrb[0].mxu0 %v1249
  %v1317 = vpop.f32.mrb[0].mxu0
  %v1318 = vadd.f32 0.0, %v1317
  %v1319 = vpop.f32.mrb[0].mxu0
  %1320 = vdwg.mxu0
  %1321 = vset.pattern.permute.xlu0 2
  %1322 = vperm.xlu0 %1321, %v30
  %v1323 = vpop.permute.xlu0 %1322
  %v1325 = vadd.f32 %v1323, %v1318
  %s1326 = scalar_lea.vmem %s5, 128
  %v1327 = vld [vmem:[%s1326] sm:$0xff]
  %v1328 = vld [vmem:[%s1326 + $0x8] sm:$0xff]
  %v1329 = vld [vmem:[%s1326 + $0x10] sm:$0xff]
  %v1330 = vld [vmem:[%s1326 + $0x18] sm:$0xff]
  %v1331 = vld [vmem:[%s1326 + $0x20] sm:$0xff]
  %v1332 = vld [vmem:[%s1326 + $0x28] sm:$0xff]
  %v1333 = vld [vmem:[%s1326 + $0x30] sm:$0xff]
  %v1334 = vld [vmem:[%s1326 + $0x38] sm:$0xff]
  %v1335 = vld [vmem:[%s1326 + $0x40] sm:$0xff]
  %v1336 = vld [vmem:[%s1326 + $0x48] sm:$0xff]
  %v1337 = vld [vmem:[%s1326 + $0x50] sm:$0xff]
  %v1338 = vld [vmem:[%s1326 + $0x58] sm:$0xff]
  %v1339 = vld [vmem:[%s1326 + $0x60] sm:$0xff]
  %v1340 = vld [vmem:[%s1326 + $0x68] sm:$0xff]
  %v1341 = vld [vmem:[%s1326 + $0x70] sm:$0xff]
  %v1342 = vld [vmem:[%s1326 + $0x78] sm:$0xff]
  %1343 = vmatprep.subr.mxu0 0.0
  %1344 = vmatpush1.msra.mxu0 %v1327
  %1345 = vmatprep.subr.mxu0 0.0
  %1346 = vmatpush1.msra.mxu0 %v1328
  %1347 = vmatprep.subr.mxu0 0.0
  %1348 = vmatpush1.msra.mxu0 %v1329
  %1349 = vmatprep.subr.mxu0 0.0
  %1350 = vmatpush1.msra.mxu0 %v1330
  %1351 = vmatprep.subr.mxu0 0.0
  %1352 = vmatpush1.msra.mxu0 %v1331
  %1353 = vmatprep.subr.mxu0 0.0
  %1354 = vmatpush1.msra.mxu0 %v1332
  %1355 = vmatprep.subr.mxu0 0.0
  %1356 = vmatpush1.msra.mxu0 %v1333
  %1357 = vmatprep.subr.mxu0 0.0
  %1358 = vmatpush1.msra.mxu0 %v1334
  %1359 = vmatprep.subr.mxu0 0.0
  %1360 = vmatpush1.msra.mxu0 %v1335
  %1361 = vmatprep.subr.mxu0 0.0
  %1362 = vmatpush1.msra.mxu0 %v1336
  %1363 = vmatprep.subr.mxu0 0.0
  %1364 = vmatpush1.msra.mxu0 %v1337
  %1365 = vmatprep.subr.mxu0 0.0
  %1366 = vmatpush1.msra.mxu0 %v1338
  %1367 = vmatprep.subr.mxu0 0.0
  %1368 = vmatpush1.msra.mxu0 %v1339
  %1369 = vmatprep.subr.mxu0 0.0
  %1370 = vmatpush1.msra.mxu0 %v1340
  %1371 = vmatprep.subr.mxu0 0.0
  %1372 = vmatpush1.msra.mxu0 %v1341
  %1373 = vmatprep.subr.mxu0 0.0
  %1374 = vmatpush1.msra.mxu0 %v1342
  %1375 = vmatprep.subr.mxu0 0.0
  %1376 = vmatpush1.msra.mxu0 0.0
  %1377 = vmatprep.subr.mxu0 0.0
  %1378 = vmatpush1.msra.mxu0 0.0
  %1379 = vmatprep.subr.mxu0 0.0
  %1380 = vmatpush1.msra.mxu0 0.0
  %1381 = vmatprep.subr.mxu0 0.0
  %1382 = vmatpush1.msra.mxu0 0.0
  %1383 = vmatprep.subr.mxu0 0.0
  %1384 = vmatpush1.msra.mxu0 0.0
  %1385 = vmatprep.subr.mxu0 0.0
  %1386 = vmatpush1.msra.mxu0 0.0
  %1387 = vmatprep.subr.mxu0 0.0
  %1388 = vmatpush1.msra.mxu0 0.0
  %1389 = vmatprep.subr.mxu0 0.0
  %1390 = vmatpush1.msra.mxu0 0.0
  %1391 = vmatprep.subr.mxu0 0.0
  %1392 = vmatpush1.msra.mxu0 0.0
  %1393 = vmatprep.subr.mxu0 0.0
  %1394 = vmatpush1.msra.mxu0 0.0
  %1395 = vmatprep.subr.mxu0 0.0
  %1396 = vmatpush1.msra.mxu0 0.0
  %1397 = vmatprep.subr.mxu0 0.0
  %1398 = vmatpush1.msra.mxu0 0.0
  %1399 = vmatprep.subr.mxu0 0.0
  %1400 = vmatpush1.msra.mxu0 0.0
  %1401 = vmatprep.subr.mxu0 0.0
  %1402 = vmatpush1.msra.mxu0 0.0
  %1403 = vmatprep.subr.mxu0 0.0
  %1404 = vmatpush1.msra.mxu0 0.0
  %1405 = vmatprep.subr.mxu0 0.0
  %1406 = vmatpush1.msra.mxu0 0.0
  %1407 = vmatprep.mubr.f32.mxu0 0.0
  %1408 = vmatmul.mubr.f32.gmra.mrb[0].mxu0 %v1154
  %v1409 = vpop.f32.mrb[0].mxu0
  %v1410 = vadd.f32 0.0, %v1409
  %v1411 = vpop.f32.mrb[0].mxu0
  %1412 = vmatprep.mubr.f32.mxu0 0.0
  %1413 = vmatmul.mubr.f32.gmra.mrb[0].mxu0 %v1155
  %v1414 = vpop.f32.mrb[0].mxu0
  %v1415 = vadd.f32 0.0, %v1414
  %v1416 = vpop.f32.mrb[0].mxu0
  %1417 = vdwg.mxu0
  %s1418 = scalar_lea.vmem %s6, 4
  %v1419 = vld [vmem:[%s1418] sm:$0xf]
  %v1421 = vsel %vm1099, %v1419, 0
  %1423 = vmatprep.subr.mxu0 0.0
  %1424 = vmatpush1.msra.mxu0 %v1410
  %1425 = vmatprep.subr.mxu0 0.0
  %1426 = vmatpush1.msra.mxu0 %v1415
  %1427 = vmatprep.subr.mxu0 0.0
  %1428 = vmatpush1.msra.mxu0 0.0
  %1429 = vmatprep.subr.mxu0 0.0
  %1430 = vmatpush1.msra.mxu0 0.0
  %1431 = vmatprep.subr.mxu0 0.0
  %1432 = vmatpush1.msra.mxu0 0.0
  %1433 = vmatprep.subr.mxu0 0.0
  %1434 = vmatpush1.msra.mxu0 0.0
  %1435 = vmatprep.subr.mxu0 0.0
  %1436 = vmatpush1.msra.mxu0 0.0
  %1437 = vmatprep.subr.mxu0 0.0
  %1438 = vmatpush1.msra.mxu0 0.0
  %1439 = vmatprep.subr.mxu0 0.0
  %1440 = vmatpush1.msra.mxu0 0.0
  %1441 = vmatprep.subr.mxu0 0.0
  %1442 = vmatpush1.msra.mxu0 0.0
  %1443 = vmatprep.subr.mxu0 0.0
  %1444 = vmatpush1.msra.mxu0 0.0
  %1445 = vmatprep.subr.mxu0 0.0
  %1446 = vmatpush1.msra.mxu0 0.0
  %1447 = vmatprep.subr.mxu0 0.0
  %1448 = vmatpush1.msra.mxu0 0.0
  %1449 = vmatprep.subr.mxu0 0.0
  %1450 = vmatpush1.msra.mxu0 0.0
  %1451 = vmatprep.subr.mxu0 0.0
  %1452 = vmatpush1.msra.mxu0 0.0
  %1453 = vmatprep.subr.mxu0 0.0
  %1454 = vmatpush1.msra.mxu0 0.0
  %1455 = vmatprep.subr.mxu0 0.0
  %1456 = vmatpush1.msra.mxu0 0.0
  %1457 = vmatprep.subr.mxu0 0.0
  %1458 = vmatpush1.msra.mxu0 0.0
  %1459 = vmatprep.subr.mxu0 0.0
  %1460 = vmatpush1.msra.mxu0 0.0
  %1461 = vmatprep.subr.mxu0 0.0
  %1462 = vmatpush1.msra.mxu0 0.0
  %1463 = vmatprep.subr.mxu0 0.0
  %1464 = vmatpush1.msra.mxu0 0.0
  %1465 = vmatprep.subr.mxu0 0.0
  %1466 = vmatpush1.msra.mxu0 0.0
  %1467 = vmatprep.subr.mxu0 0.0
  %1468 = vmatpush1.msra.mxu0 0.0
  %1469 = vmatprep.subr.mxu0 0.0
  %1470 = vmatpush1.msra.mxu0 0.0
  %1471 = vmatprep.subr.mxu0 0.0
  %1472 = vmatpush1.msra.mxu0 0.0
  %1473 = vmatprep.subr.mxu0 0.0
  %1474 = vmatpush1.msra.mxu0 0.0
  %1475 = vmatprep.subr.mxu0 0.0
  %1476 = vmatpush1.msra.mxu0 0.0
  %1477 = vmatprep.subr.mxu0 0.0
  %1478 = vmatpush1.msra.mxu0 0.0
  %1479 = vmatprep.subr.mxu0 0.0
  %1480 = vmatpush1.msra.mxu0 0.0
  %1481 = vmatprep.subr.mxu0 0.0
  %1482 = vmatpush1.msra.mxu0 0.0
  %1483 = vmatprep.subr.mxu0 0.0
  %1484 = vmatpush1.msra.mxu0 0.0
  %1485 = vmatprep.subr.mxu0 0.0
  %1486 = vmatpush1.msra.mxu0 0.0
  %1487 = vmatprep.mubr.f32.mxu0 0.0
  %1488 = vmatmul.mubr.f32.gmra.mrb[0].mxu0 %v1421
  %v1489 = vpop.f32.mrb[0].mxu0
  %v1490 = vadd.f32 0.0, %v1489
  %v1491 = vpop.f32.mrb[0].mxu0
  %1492 = vdwg.mxu0
  %v1493 = vadd.f32 %v1325, %v1490
  %vm1494 = vcmask 60416
  %1495 = vst.msk [vmem:[%s8] sm:$0xf] %vm1494, %v1493
  // Predicated region
  $region34: #{eegnet_forward.1} parent=0 // pred_check
    _
  $region35: #{eegnet_forward.1} parent=0 // pred_check_branch
    %1497 = sbr.rel (0) target = $region37
  $region36: #{eegnet_forward.1} parent=0 // pred_region
    _
  $region37: #{eegnet_forward.1} parent=0 // pred_fallthru
    _
  // Predicated region
  $region38: #{eegnet_forward.1} parent=0 // pred_check
    _
  $region39: #{eegnet_forward.1} parent=0 // pred_check_branch
    %1499 = sbr.rel (0) target = $region41
  $region40: #{eegnet_forward.1} parent=0 // pred_region
    _
  $region41: #{eegnet_forward.1} parent=0 // pred_fallthru
    _

</llo_original>
